<compile_context>
chip_gen: v7x
topology: tpu7x:2x2x1
jax: 0.10.0
libtpu: 0.0.40
codegen_flags: <defaults>
</compile_context>

<pallas_src>
import jax
import jax.numpy as jnp
from jax.experimental import pallas as pl
from jax.experimental.pallas import tpu as pltpu

# ---- config (mirrors config / config.net_config of the PyTorch module) ----
SCALE = 2
CHNS_FEAT = 8
CHNS_IN = 3
N_BLOCK = 2
KERNEL = 3
DENSE_I = True
DENSE_A = True
SZ_A = (2, 2)          # angular resolution
SZ_S = (8, 8)          # spatial resolution

A0, A1 = SZ_A
S0, S1 = SZ_S
N_VIEW = A0 * A1                               # 4
N_PIX = S0 * S1                                # 64
CIN_BODY = CHNS_FEAT + (CHNS_IN if DENSE_I else 0)                       # 11
CIN_TAIL = (N_BLOCK * CHNS_FEAT if DENSE_A else CHNS_FEAT) + \
           (CHNS_IN if DENSE_I else 0)                                   # 19
COUT_TAIL = CHNS_IN * A0 * A1 * SCALE ** 2                               # 48

# ---- packed weight-slab layout (128-aligned lane offsets, bf16) ----
K_HEAD = 9 * CHNS_IN                           # 27
K_BODY = 9 * CIN_BODY                          # 99
K_TAIL0 = N_VIEW * CIN_TAIL                    # 76
OFF_H, OFF_B0, OFF_B1, OFF_T0 = 0, 128, 256, 384
W_SLAB_W = 512
N_BIAS = 4 * CHNS_FEAT + COUT_TAIL             # 80

MAX_BB = 8             # batch-pack factor cap (sweep higher on big batches)


# ------------------------------ fused Pallas kernel ---------------------------
def _dknet_kernel(x_ref, mask_ref, w_ref, wt1_ref, b_ref, o_ref):
    """Whole DKNet forward for BB packed batch elements; all on-chip."""
    lanes = x_ref.shape[-1]                     # 4 * BB * 64
    vb = lanes // N_VIEW                        # BB * 64
    inp = x_ref[0]                              # (3, lanes) f32
    mask = mask_ref[...]                        # (9, lanes) f32

    def tap_stack(a):
        """im2col: 9 lane-rotated + boundary-masked tap copies stacked along K."""
        parts = []
        for t in range(9):                      # static, fully unrolled
            s = (t // 3 - 1) * S1 + (t % 3 - 1)
            if s == 0:
                parts.append(a)                 # center tap: mask is all ones
            else:
                # want result[:, p] = a[:, (p + s) % lanes]  ==  jnp.roll by -s
                rolled = pltpu.roll(a, shift=(-s) % lanes, axis=1)
                parts.append(rolled * mask[t:t + 1, :])
        return jnp.concatenate(parts, axis=0)   # (9*c, lanes) f32

    def bias(off, n):
        return b_ref[off:off + n, :]            # (n, 1) f32, lane-broadcast

    def mm(w_bf16, a_f32):                      # bf16 MXU matmul, f32 accumulate
        return jnp.dot(w_bf16, a_f32.astype(jnp.bfloat16),
                       preferred_element_type=jnp.float32)

    inp_taps = tap_stack(inp)                                            # (27, lanes)

    # head (SpatialConv 3->8): one (8,27)x(27,N) matmul + bias + ReLU
    x = jnp.maximum(mm(w_ref[:, OFF_H:OFF_H + K_HEAD], inp_taps) + bias(0, 8), 0.0)

    # body0 (DKernel: conv(lf_cat([x, inp])) 11->8): one (8,99)x(99,N) matmul
    st0 = jnp.concatenate([tap_stack(x), inp_taps], axis=0)              # (99, lanes)
    x0 = jnp.maximum(mm(w_ref[:, OFF_B0:OFF_B0 + K_BODY], st0) + bias(8, 8), 0.0)

    # body1 (DKernel: conv(lf_cat([x0, inp])) 11->8)
    st1 = jnp.concatenate([tap_stack(x0), inp_taps], axis=0)
    x1 = jnp.maximum(mm(w_ref[:, OFF_B1:OFF_B1 + K_BODY], st1) + bias(16, 8), 0.0)

    # tail0: AngularConv(19->8, k=3, s=2, p=1) on the 2x2 angular grid ==
    # one view-stacked (8,76)x(76, BB*64) matmul (slices are 128-aligned).
    feat = jnp.concatenate([x0, x1, inp], axis=0)                        # (19, lanes)
    feat_v = jnp.concatenate(
        [feat[:, v * vb:(v + 1) * vb] for v in range(N_VIEW)], axis=0)   # (76, vb)
    z = jnp.maximum(mm(w_ref[:, OFF_T0:OFF_T0 + K_TAIL0], feat_v) + bias(24, 8), 0.0)

    # tail1: AngularConv(8->48, 1x1) == plain matmul (no ReLU).
    y = mm(wt1_ref[...], z) + bias(32, COUT_TAIL)                        # (48, vb)
    o_ref[0] = y


# ------------------------------ parameter handling ----------------------------
def _winit(key, kh, kw, cin, cout):
    kw_, kb_ = jax.random.split(key)
    fan_in = kh * kw * cin
    w = jax.random.normal(kw_, (kh, kw, cin, cout), jnp.float32) / jnp.sqrt(float(fan_in))
    b = 0.01 * jax.random.normal(kb_, (cout,), jnp.float32)
    return w, b


def init_params(key):
    """Original (kh, kw, cin, cout) conv weights, exact DKNet channel bookkeeping."""
    keys = jax.random.split(key, 4 + N_BLOCK)
    p = {}
    p["head_w"], p["head_b"] = _winit(keys[0], 3, 3, CHNS_IN, CHNS_FEAT)
    chns_i = CHNS_IN if DENSE_I else 0
    chns_a = 0
    chns = chns_i + chns_a + CHNS_FEAT
    for i in range(N_BLOCK):
        p[f"body{i}_w"], p[f"body{i}_b"] = _winit(keys[1 + i], KERNEL, KERNEL, chns, CHNS_FEAT)
        chns = chns_i + chns_a + CHNS_FEAT
        if DENSE_A:
            chns_a += CHNS_FEAT
    p["tail0_w"], p["tail0_b"] = _winit(keys[-2], 3, 3, chns, CHNS_FEAT)
    ka = (SZ_A[0] // 2, SZ_A[1] // 2)
    p["tail1_w"], p["tail1_b"] = _winit(keys[-1], ka[0], ka[1], CHNS_FEAT, COUT_TAIL)
    return p


def _build_tap_masks():
    """(9, 64) f32: per 3x3 tap, which output pixels have a valid (unpadded) input."""
    d = jnp.arange(3) - 1
    s0 = jnp.arange(S0)
    s1 = jnp.arange(S1)
    ok_h = ((s0[None, :] + d[:, None]) >= 0) & ((s0[None, :] + d[:, None]) < S0)  # (3, 8)
    ok_w = ((s1[None, :] + d[:, None]) >= 0) & ((s1[None, :] + d[:, None]) < S1)  # (3, 8)
    m = (ok_h[:, None, :, None] & ok_w[None, :, None, :]).astype(jnp.float32)     # (3,3,8,8)
    return m.reshape(9, N_PIX)                                                    # (9, 64)


def fold_params(p):
    """Fold / stack / pack weights once into the slabs the fused kernel consumes."""
    def stack_taps(w):    # (3,3,cin,cout) -> (cout, 9*cin), column = tap*cin + c
        return jnp.transpose(w, (3, 0, 1, 2)).reshape(w.shape[3], 9 * w.shape[2])

    def stack_body(w):    # columns reordered to [x taps (72) | inp taps (27)]
        wx = stack_taps(w[:, :, :CHNS_FEAT, :])                      # (8, 72)
        wi = stack_taps(w[:, :, CHNS_FEAT:, :])                      # (8, 27)
        return jnp.concatenate([wx, wi], axis=1)                     # (8, 99)

    wh = stack_taps(p["head_w"])                                     # (8, 27)
    wb0 = stack_body(p["body0_w"])                                   # (8, 99)
    wb1 = stack_body(p["body1_w"])                                   # (8, 99)
    # tail0 (stride 2, pad 1 on a 2x2 grid): only taps (1+a0, 1+a1) touch data;
    # stack the 4 view matrices along K -> column = v*19 + c.
    w0 = p["tail0_w"][1:1 + A0, 1:1 + A1]                            # (2, 2, 19, 8)
    wt0 = jnp.transpose(w0, (3, 0, 1, 2)).reshape(CHNS_FEAT, K_TAIL0)  # (8, 76)

    slab = jnp.zeros((CHNS_FEAT, W_SLAB_W), jnp.float32)
    slab = slab.at[:, OFF_H:OFF_H + K_HEAD].set(wh)
    slab = slab.at[:, OFF_B0:OFF_B0 + K_BODY].set(wb0)
    slab = slab.at[:, OFF_B1:OFF_B1 + K_BODY].set(wb1)
    slab = slab.at[:, OFF_T0:OFF_T0 + K_TAIL0].set(wt0)

    k = {
        "w_slab": slab.astype(jnp.bfloat16),                                   # (8, 512)
        "wt1": jnp.transpose(p["tail1_w"][0, 0], (1, 0)).astype(jnp.bfloat16),  # (48, 8)
        "b_slab": jnp.concatenate([p["head_b"], p["body0_b"], p["body1_b"],
                                   p["tail0_b"], p["tail1_b"]]).reshape(N_BIAS, 1),
        "mask": _build_tap_masks(),                                            # (9, 64)
    }
    return k


# -------------------------------- DKNet forward -------------------------------
def _pick_bb(b, max_bb=MAX_BB):
    """Largest batch-pack factor dividing b, preferring a grid of >=2 steps
    (keeps both v7x TensorCores busy via the 'parallel' grid axis)."""
    divs = [d for d in range(1, min(b, max_bb) + 1) if b % d == 0]
    multi = [d for d in divs if b // d >= 2]
    return max(multi) if multi else max(divs)


@jax.jit
def dknet_forward(inp, kp):
    """Input (B, 3, A0, A1, S0, S1) -> Output (B, 3, A0, A1, S0*scale, S1*scale)."""
    b = inp.shape[0]
    bb = _pick_bb(b)                  # static at trace time
    nb = b // bb
    vb = bb * N_PIX                   # lanes per view block  (= output width)
    lanes = N_VIEW * vb               # packed lane width per grid step

    # pack: lane = v*(bb*64) + e*64 + (s0*8+s1)   (view-major, element, pixel)
    x = inp.reshape(nb, bb, CHNS_IN, N_VIEW, N_PIX)
    x = jnp.transpose(x, (0, 2, 3, 1, 4)).reshape(nb, CHNS_IN, lanes)
    mask = jnp.tile(kp["mask"], (1, N_VIEW * bb))                      # (9, lanes)

    y = pl.pallas_call(
        _dknet_kernel,
        out_shape=jax.ShapeDtypeStruct((nb, COUT_TAIL, vb), jnp.float32),
        grid=(nb,),
        in_specs=[
            pl.BlockSpec((1, CHNS_IN, lanes), lambda i: (i, 0, 0)),     # packed input
            pl.BlockSpec((9, lanes), lambda i: (0, 0)),                 # tap masks (resident)
            pl.BlockSpec((CHNS_FEAT, W_SLAB_W), lambda i: (0, 0)),      # packed weight slab
            pl.BlockSpec((COUT_TAIL, CHNS_FEAT), lambda i: (0, 0)),     # tail1 weight
            pl.BlockSpec((N_BIAS, 1), lambda i: (0, 0)),                # packed biases
        ],
        out_specs=pl.BlockSpec((1, COUT_TAIL, vb), lambda i: (i, 0, 0)),
        compiler_params=pltpu.CompilerParams(dimension_semantics=("parallel",)),
    )(x, mask, kp["w_slab"], kp["wt1"], kp["b_slab"])

    # unpack the packed batch elements, then the view/permute/PixelShuffle chain
    # (pure layout on the tiny (B, 48, 64) tensor):
    # channel c48 = c*16 + ry*8 + rx*4 + a0*2 + a1, pixel = s0*8 + s1.
    y = jnp.transpose(y.reshape(nb, COUT_TAIL, bb, N_PIX), (0, 2, 1, 3))
    y = y.reshape(b, COUT_TAIL, N_PIX)
    y = y.reshape(b, CHNS_IN, SCALE, SCALE, A0, A1, S0, S1)
    y = jnp.transpose(y, (0, 1, 4, 5, 6, 2, 7, 3))
    return y.reshape(b, CHNS_IN, A0, A1, S0 * SCALE, S1 * SCALE)


# --------------------------- pure-JAX reference model -------------------------
def _conv2d_ref(x, w, b, *, stride=(1, 1), padding=(0, 0), relu=False, bf16_ops=False):
    if bf16_ops:   # emulate bf16 MXU operands with f32 accumulation
        x = x.astype(jnp.bfloat16).astype(jnp.float32)
        w = w.astype(jnp.bfloat16).astype(jnp.float32)
    kh, kw, _, cout = w.shape
    ph, pw = padding
    sh, sw = stride
    xp = jnp.pad(x, ((0, 0), (0, 0), (ph, ph), (pw, pw)))
    ho = (x.shape[2] + 2 * ph - kh) // sh + 1
    wo = (x.shape[3] + 2 * pw - kw) // sw + 1
    out = jnp.zeros((x.shape[0], cout, ho, wo), jnp.float32)
    for i in range(kh):
        for j in range(kw):
            patch = xp[:, :, i:i + sh * (ho - 1) + 1:sh, j:j + sw * (wo - 1) + 1:sw]
            out = out + jnp.einsum("ncyx,co->noyx", patch, w[i, j],
                                   precision=jax.lax.Precision.HIGHEST)
    out = out + b[None, :, None, None]
    return jnp.maximum(out, 0.0) if relu else out


def dknet_ref(inp, p, bf16_ops=False):
    """Literal (unfused) mirror of the PyTorch forward, for correctness check."""
    b, chns, a0, a1, s0, s1 = inp.shape
    inp_s = jnp.transpose(inp, (0, 2, 3, 1, 4, 5)).reshape(b * a0 * a1, chns, s0, s1)
    x = _conv2d_ref(inp_s, p["head_w"], p["head_b"], padding=(1, 1), relu=True,
                    bf16_ops=bf16_ops)
    dense_a, dense_i = [], ([inp_s] if DENSE_I else [])
    pad = KERNEL // 2
    for i in range(N_BLOCK):
        cat = jnp.concatenate([x, *dense_a[:-1], *dense_i], axis=1)
        x = _conv2d_ref(cat, p[f"body{i}_w"], p[f"body{i}_b"],
                        padding=(pad, pad), relu=True, bf16_ops=bf16_ops)
        if DENSE_A:
            dense_a.append(x)
    feats = dense_a if DENSE_A else [x]
    x = jnp.concatenate([*feats, *dense_i], axis=1)
    c = x.shape[1]
    xa = jnp.transpose(x.reshape(b, a0, a1, c, s0, s1), (0, 4, 5, 3, 1, 2))
    xa = xa.reshape(b * s0 * s1, c, a0, a1)
    xa = _conv2d_ref(xa, p["tail0_w"], p["tail0_b"],
                     stride=(2, 2), padding=(1, 1), relu=True, bf16_ops=bf16_ops)
    xa = _conv2d_ref(xa, p["tail1_w"], p["tail1_b"], relu=False, bf16_ops=bf16_ops)
    x = xa.reshape(b, s0, s1, chns * SCALE ** 2, a0 * a1)
    x = jnp.transpose(x, (0, 4, 3, 1, 2)).reshape(b * a0 * a1, chns * SCALE ** 2, s0, s1)
    x = x.reshape(b * a0 * a1, chns, SCALE, SCALE, s0, s1)             # PixelShuffle
    x = jnp.transpose(x, (0, 1, 4, 2, 5, 3)).reshape(b * a0 * a1, chns,
                                                     s0 * SCALE, s1 * SCALE)
    x = x.reshape(b, a0, a1, chns, s0 * SCALE, s1 * SCALE)
    return jnp.transpose(x, (0, 3, 1, 2, 4, 5))


# ----------------------------------- main --------------------------------------
if __name__ == "__main__":
    key = jax.random.PRNGKey(0)
    k_in, k_par = jax.random.split(key)
    B = 8                                                   # -> BB=4, grid=(2,)
    inp = jax.random.normal(k_in, (B, CHNS_IN, A0, A1, S0, S1), jnp.float32)
    params = init_params(k_par)
    kparams = fold_params(params)

    out = jax.block_until_ready(dknet_forward(inp, kparams))

    expected = (B, CHNS_IN, A0, A1, S0 * SCALE, S1 * SCALE)
    assert out.shape == expected, (out.shape, expected)
    assert bool(jnp.all(jnp.isfinite(out)))

    # Reference with bf16-rounded matmul operands + f32 accumulation (matches
    # the kernel's MXU precision), so a tight tolerance stays meaningful.
    ref = jax.block_until_ready(dknet_ref(inp, params, bf16_ops=True))
    assert bool(jnp.allclose(out, ref, rtol=1e-2, atol=1e-2)), \
        float(jnp.max(jnp.abs(out - ref)))

    print("KERNEL_OK")
</pallas_src>

<mosaic_0001>
module attributes {stable_mosaic.version = 11 : i64} {
  func.func @_dknet_kernel(%arg0: i32, %arg1: memref<1x3x1024xf32, #tpu.memory_space<vmem>>, %arg2: memref<9x1024xf32, #tpu.memory_space<vmem>>, %arg3: memref<8x512xbf16, #tpu.memory_space<vmem>>, %arg4: memref<48x8xbf16, #tpu.memory_space<vmem>>, %arg5: memref<80x1xf32, #tpu.memory_space<vmem>>, %arg6: memref<1x48x256xf32, #tpu.memory_space<vmem>>) attributes {dimension_semantics = [#tpu.dimension_semantics<parallel>], iteration_bounds = array<i64: 2>, scalar_prefetch = 0 : i64, scratch_operands = 0 : i64, tpu.core_type = #tpu.core_type<tc>, window_params = [{transform_indices = @transform_0, window_bounds = array<i64: 1, 3, 1024>}, {pipeline_mode = #tpu.pipeline_mode<synchronous>, transform_indices = @transform_1, window_bounds = array<i64: 9, 1024>}, {pipeline_mode = #tpu.pipeline_mode<synchronous>, transform_indices = @transform_2, window_bounds = array<i64: 8, 512>}, {pipeline_mode = #tpu.pipeline_mode<synchronous>, transform_indices = @transform_3, window_bounds = array<i64: 48, 8>}, {pipeline_mode = #tpu.pipeline_mode<synchronous>, transform_indices = @transform_4, window_bounds = array<i64: 80, 1>}, {transform_indices = @transform_5, window_bounds = array<i64: 1, 48, 256>}]} {
    %c0 = arith.constant 0 : index
    %c0_0 = arith.constant 0 : index
    %c0_1 = arith.constant 0 : index
    %0 = vector.load %arg1[%c0, %c0_0, %c0_1] : memref<1x3x1024xf32, #tpu.memory_space<vmem>>, vector<1x3x1024xf32>
    %1 = vector.shape_cast %0 : vector<1x3x1024xf32> to vector<3x1024xf32>
    %c0_2 = arith.constant 0 : index
    %c0_3 = arith.constant 0 : index
    %2 = vector.load %arg2[%c0_2, %c0_3] : memref<9x1024xf32, #tpu.memory_space<vmem>>, vector<9x1024xf32>
    %c9_i32 = arith.constant 9 : i32
    %3 = tpu.dynamic_rotate %1 by %c9_i32 dim 1 : vector<3x1024xf32>, i32 -> vector<3x1024xf32>
    %4 = vector.extract_strided_slice %2 {offsets = [0, 0], sizes = [1, 1024], strides = [1, 1]} : vector<9x1024xf32> to vector<1x1024xf32>
    %5 = vector.broadcast %4 : vector<1x1024xf32> to vector<3x1024xf32>
    %6 = arith.mulf %3, %5 : vector<3x1024xf32>
    %c8_i32 = arith.constant 8 : i32
    %7 = tpu.dynamic_rotate %1 by %c8_i32 dim 1 : vector<3x1024xf32>, i32 -> vector<3x1024xf32>
    %8 = vector.extract_strided_slice %2 {offsets = [1, 0], sizes = [1, 1024], strides = [1, 1]} : vector<9x1024xf32> to vector<1x1024xf32>
    %9 = vector.broadcast %8 : vector<1x1024xf32> to vector<3x1024xf32>
    %10 = arith.mulf %7, %9 : vector<3x1024xf32>
    %c7_i32 = arith.constant 7 : i32
    %11 = tpu.dynamic_rotate %1 by %c7_i32 dim 1 : vector<3x1024xf32>, i32 -> vector<3x1024xf32>
    %12 = vector.extract_strided_slice %2 {offsets = [2, 0], sizes = [1, 1024], strides = [1, 1]} : vector<9x1024xf32> to vector<1x1024xf32>
    %13 = vector.broadcast %12 : vector<1x1024xf32> to vector<3x1024xf32>
    %14 = arith.mulf %11, %13 : vector<3x1024xf32>
    %c1_i32 = arith.constant 1 : i32
    %15 = tpu.dynamic_rotate %1 by %c1_i32 dim 1 : vector<3x1024xf32>, i32 -> vector<3x1024xf32>
    %16 = vector.extract_strided_slice %2 {offsets = [3, 0], sizes = [1, 1024], strides = [1, 1]} : vector<9x1024xf32> to vector<1x1024xf32>
    %17 = vector.broadcast %16 : vector<1x1024xf32> to vector<3x1024xf32>
    %18 = arith.mulf %15, %17 : vector<3x1024xf32>
    %c1023_i32 = arith.constant 1023 : i32
    %19 = tpu.dynamic_rotate %1 by %c1023_i32 dim 1 : vector<3x1024xf32>, i32 -> vector<3x1024xf32>
    %20 = vector.extract_strided_slice %2 {offsets = [5, 0], sizes = [1, 1024], strides = [1, 1]} : vector<9x1024xf32> to vector<1x1024xf32>
    %21 = vector.broadcast %20 : vector<1x1024xf32> to vector<3x1024xf32>
    %22 = arith.mulf %19, %21 : vector<3x1024xf32>
    %c1017_i32 = arith.constant 1017 : i32
    %23 = tpu.dynamic_rotate %1 by %c1017_i32 dim 1 : vector<3x1024xf32>, i32 -> vector<3x1024xf32>
    %24 = vector.extract_strided_slice %2 {offsets = [6, 0], sizes = [1, 1024], strides = [1, 1]} : vector<9x1024xf32> to vector<1x1024xf32>
    %25 = vector.broadcast %24 : vector<1x1024xf32> to vector<3x1024xf32>
    %26 = arith.mulf %23, %25 : vector<3x1024xf32>
    %c1016_i32 = arith.constant 1016 : i32
    %27 = tpu.dynamic_rotate %1 by %c1016_i32 dim 1 : vector<3x1024xf32>, i32 -> vector<3x1024xf32>
    %28 = vector.extract_strided_slice %2 {offsets = [7, 0], sizes = [1, 1024], strides = [1, 1]} : vector<9x1024xf32> to vector<1x1024xf32>
    %29 = vector.broadcast %28 : vector<1x1024xf32> to vector<3x1024xf32>
    %30 = arith.mulf %27, %29 : vector<3x1024xf32>
    %c1015_i32 = arith.constant 1015 : i32
    %31 = tpu.dynamic_rotate %1 by %c1015_i32 dim 1 : vector<3x1024xf32>, i32 -> vector<3x1024xf32>
    %32 = vector.extract_strided_slice %2 {offsets = [8, 0], sizes = [1, 1024], strides = [1, 1]} : vector<9x1024xf32> to vector<1x1024xf32>
    %33 = vector.broadcast %32 : vector<1x1024xf32> to vector<3x1024xf32>
    %34 = arith.mulf %31, %33 : vector<3x1024xf32>
    %35 = tpu.concatenate %6, %10, %14, %18, %1, %22, %26, %30, %34 in 0 : vector<3x1024xf32>, vector<3x1024xf32>, vector<3x1024xf32>, vector<3x1024xf32>, vector<3x1024xf32>, vector<3x1024xf32>, vector<3x1024xf32>, vector<3x1024xf32>, vector<3x1024xf32> -> vector<27x1024xf32>
    %c0_4 = arith.constant 0 : index
    %c0_5 = arith.constant 0 : index
    %36 = vector.load %arg3[%c0_4, %c0_5] : memref<8x512xbf16, #tpu.memory_space<vmem>>, vector<8x27xbf16>
    %37 = arith.truncf %35 : vector<27x1024xf32> to vector<27x1024xbf16>
    %cst = arith.constant dense<0.000000e+00> : vector<8x1024xf32>
    %38 = tpu.matmul %36, %37, %cst {dimension_numbers = #tpu.dot_dimension_numbers<[1], [0], [0], [1], [0, 0, 1, 1], [], []>} : vector<8x27xbf16>, vector<27x1024xbf16>, vector<8x1024xf32> -> vector<8x1024xf32>
    %c0_6 = arith.constant 0 : index
    %c0_7 = arith.constant 0 : index
    %39 = vector.load %arg5[%c0_6, %c0_7] : memref<80x1xf32, #tpu.memory_space<vmem>>, vector<8x1xf32>
    %40 = vector.broadcast %39 : vector<8x1xf32> to vector<8x1024xf32>
    %41 = arith.addf %38, %40 : vector<8x1024xf32>
    %cst_8 = arith.constant 0.000000e+00 : f32
    %42 = vector.broadcast %cst_8 : f32 to vector<8x1024xf32>
    %43 = arith.maximumf %41, %42 : vector<8x1024xf32>
    %c9_i32_9 = arith.constant 9 : i32
    %44 = tpu.dynamic_rotate %43 by %c9_i32_9 dim 1 : vector<8x1024xf32>, i32 -> vector<8x1024xf32>
    %45 = vector.extract_strided_slice %2 {offsets = [0, 0], sizes = [1, 1024], strides = [1, 1]} : vector<9x1024xf32> to vector<1x1024xf32>
    %46 = vector.broadcast %45 : vector<1x1024xf32> to vector<8x1024xf32>
    %47 = arith.mulf %44, %46 : vector<8x1024xf32>
    %c8_i32_10 = arith.constant 8 : i32
    %48 = tpu.dynamic_rotate %43 by %c8_i32_10 dim 1 : vector<8x1024xf32>, i32 -> vector<8x1024xf32>
    %49 = vector.extract_strided_slice %2 {offsets = [1, 0], sizes = [1, 1024], strides = [1, 1]} : vector<9x1024xf32> to vector<1x1024xf32>
    %50 = vector.broadcast %49 : vector<1x1024xf32> to vector<8x1024xf32>
    %51 = arith.mulf %48, %50 : vector<8x1024xf32>
    %c7_i32_11 = arith.constant 7 : i32
    %52 = tpu.dynamic_rotate %43 by %c7_i32_11 dim 1 : vector<8x1024xf32>, i32 -> vector<8x1024xf32>
    %53 = vector.extract_strided_slice %2 {offsets = [2, 0], sizes = [1, 1024], strides = [1, 1]} : vector<9x1024xf32> to vector<1x1024xf32>
    %54 = vector.broadcast %53 : vector<1x1024xf32> to vector<8x1024xf32>
    %55 = arith.mulf %52, %54 : vector<8x1024xf32>
    %c1_i32_12 = arith.constant 1 : i32
    %56 = tpu.dynamic_rotate %43 by %c1_i32_12 dim 1 : vector<8x1024xf32>, i32 -> vector<8x1024xf32>
    %57 = vector.extract_strided_slice %2 {offsets = [3, 0], sizes = [1, 1024], strides = [1, 1]} : vector<9x1024xf32> to vector<1x1024xf32>
    %58 = vector.broadcast %57 : vector<1x1024xf32> to vector<8x1024xf32>
    %59 = arith.mulf %56, %58 : vector<8x1024xf32>
    %c1023_i32_13 = arith.constant 1023 : i32
    %60 = tpu.dynamic_rotate %43 by %c1023_i32_13 dim 1 : vector<8x1024xf32>, i32 -> vector<8x1024xf32>
    %61 = vector.extract_strided_slice %2 {offsets = [5, 0], sizes = [1, 1024], strides = [1, 1]} : vector<9x1024xf32> to vector<1x1024xf32>
    %62 = vector.broadcast %61 : vector<1x1024xf32> to vector<8x1024xf32>
    %63 = arith.mulf %60, %62 : vector<8x1024xf32>
    %c1017_i32_14 = arith.constant 1017 : i32
    %64 = tpu.dynamic_rotate %43 by %c1017_i32_14 dim 1 : vector<8x1024xf32>, i32 -> vector<8x1024xf32>
    %65 = vector.extract_strided_slice %2 {offsets = [6, 0], sizes = [1, 1024], strides = [1, 1]} : vector<9x1024xf32> to vector<1x1024xf32>
    %66 = vector.broadcast %65 : vector<1x1024xf32> to vector<8x1024xf32>
    %67 = arith.mulf %64, %66 : vector<8x1024xf32>
    %c1016_i32_15 = arith.constant 1016 : i32
    %68 = tpu.dynamic_rotate %43 by %c1016_i32_15 dim 1 : vector<8x1024xf32>, i32 -> vector<8x1024xf32>
    %69 = vector.extract_strided_slice %2 {offsets = [7, 0], sizes = [1, 1024], strides = [1, 1]} : vector<9x1024xf32> to vector<1x1024xf32>
    %70 = vector.broadcast %69 : vector<1x1024xf32> to vector<8x1024xf32>
    %71 = arith.mulf %68, %70 : vector<8x1024xf32>
    %c1015_i32_16 = arith.constant 1015 : i32
    %72 = tpu.dynamic_rotate %43 by %c1015_i32_16 dim 1 : vector<8x1024xf32>, i32 -> vector<8x1024xf32>
    %73 = vector.extract_strided_slice %2 {offsets = [8, 0], sizes = [1, 1024], strides = [1, 1]} : vector<9x1024xf32> to vector<1x1024xf32>
    %74 = vector.broadcast %73 : vector<1x1024xf32> to vector<8x1024xf32>
    %75 = arith.mulf %72, %74 : vector<8x1024xf32>
    %76 = tpu.concatenate %47, %51, %55, %59, %43, %63, %67, %71, %75 in 0 : vector<8x1024xf32>, vector<8x1024xf32>, vector<8x1024xf32>, vector<8x1024xf32>, vector<8x1024xf32>, vector<8x1024xf32>, vector<8x1024xf32>, vector<8x1024xf32>, vector<8x1024xf32> -> vector<72x1024xf32>
    %77 = tpu.concatenate %76, %35 in 0 : vector<72x1024xf32>, vector<27x1024xf32> -> vector<99x1024xf32>
    %c0_17 = arith.constant 0 : index
    %c128 = arith.constant 128 : index
    %78 = vector.load %arg3[%c0_17, %c128] : memref<8x512xbf16, #tpu.memory_space<vmem>>, vector<8x99xbf16>
    %79 = arith.truncf %77 : vector<99x1024xf32> to vector<99x1024xbf16>
    %cst_18 = arith.constant dense<0.000000e+00> : vector<8x1024xf32>
    %80 = tpu.matmul %78, %79, %cst_18 {dimension_numbers = #tpu.dot_dimension_numbers<[1], [0], [0], [1], [0, 0, 1, 1], [], []>} : vector<8x99xbf16>, vector<99x1024xbf16>, vector<8x1024xf32> -> vector<8x1024xf32>
    %c8 = arith.constant 8 : index
    %c0_19 = arith.constant 0 : index
    %81 = vector.load %arg5[%c8, %c0_19] : memref<80x1xf32, #tpu.memory_space<vmem>>, vector<8x1xf32>
    %82 = vector.broadcast %81 : vector<8x1xf32> to vector<8x1024xf32>
    %83 = arith.addf %80, %82 : vector<8x1024xf32>
    %cst_20 = arith.constant 0.000000e+00 : f32
    %84 = vector.broadcast %cst_20 : f32 to vector<8x1024xf32>
    %85 = arith.maximumf %83, %84 : vector<8x1024xf32>
    %c9_i32_21 = arith.constant 9 : i32
    %86 = tpu.dynamic_rotate %85 by %c9_i32_21 dim 1 : vector<8x1024xf32>, i32 -> vector<8x1024xf32>
    %87 = vector.extract_strided_slice %2 {offsets = [0, 0], sizes = [1, 1024], strides = [1, 1]} : vector<9x1024xf32> to vector<1x1024xf32>
    %88 = vector.broadcast %87 : vector<1x1024xf32> to vector<8x1024xf32>
    %89 = arith.mulf %86, %88 : vector<8x1024xf32>
    %c8_i32_22 = arith.constant 8 : i32
    %90 = tpu.dynamic_rotate %85 by %c8_i32_22 dim 1 : vector<8x1024xf32>, i32 -> vector<8x1024xf32>
    %91 = vector.extract_strided_slice %2 {offsets = [1, 0], sizes = [1, 1024], strides = [1, 1]} : vector<9x1024xf32> to vector<1x1024xf32>
    %92 = vector.broadcast %91 : vector<1x1024xf32> to vector<8x1024xf32>
    %93 = arith.mulf %90, %92 : vector<8x1024xf32>
    %c7_i32_23 = arith.constant 7 : i32
    %94 = tpu.dynamic_rotate %85 by %c7_i32_23 dim 1 : vector<8x1024xf32>, i32 -> vector<8x1024xf32>
    %95 = vector.extract_strided_slice %2 {offsets = [2, 0], sizes = [1, 1024], strides = [1, 1]} : vector<9x1024xf32> to vector<1x1024xf32>
    %96 = vector.broadcast %95 : vector<1x1024xf32> to vector<8x1024xf32>
    %97 = arith.mulf %94, %96 : vector<8x1024xf32>
    %c1_i32_24 = arith.constant 1 : i32
    %98 = tpu.dynamic_rotate %85 by %c1_i32_24 dim 1 : vector<8x1024xf32>, i32 -> vector<8x1024xf32>
    %99 = vector.extract_strided_slice %2 {offsets = [3, 0], sizes = [1, 1024], strides = [1, 1]} : vector<9x1024xf32> to vector<1x1024xf32>
    %100 = vector.broadcast %99 : vector<1x1024xf32> to vector<8x1024xf32>
    %101 = arith.mulf %98, %100 : vector<8x1024xf32>
    %c1023_i32_25 = arith.constant 1023 : i32
    %102 = tpu.dynamic_rotate %85 by %c1023_i32_25 dim 1 : vector<8x1024xf32>, i32 -> vector<8x1024xf32>
    %103 = vector.extract_strided_slice %2 {offsets = [5, 0], sizes = [1, 1024], strides = [1, 1]} : vector<9x1024xf32> to vector<1x1024xf32>
    %104 = vector.broadcast %103 : vector<1x1024xf32> to vector<8x1024xf32>
    %105 = arith.mulf %102, %104 : vector<8x1024xf32>
    %c1017_i32_26 = arith.constant 1017 : i32
    %106 = tpu.dynamic_rotate %85 by %c1017_i32_26 dim 1 : vector<8x1024xf32>, i32 -> vector<8x1024xf32>
    %107 = vector.extract_strided_slice %2 {offsets = [6, 0], sizes = [1, 1024], strides = [1, 1]} : vector<9x1024xf32> to vector<1x1024xf32>
    %108 = vector.broadcast %107 : vector<1x1024xf32> to vector<8x1024xf32>
    %109 = arith.mulf %106, %108 : vector<8x1024xf32>
    %c1016_i32_27 = arith.constant 1016 : i32
    %110 = tpu.dynamic_rotate %85 by %c1016_i32_27 dim 1 : vector<8x1024xf32>, i32 -> vector<8x1024xf32>
    %111 = vector.extract_strided_slice %2 {offsets = [7, 0], sizes = [1, 1024], strides = [1, 1]} : vector<9x1024xf32> to vector<1x1024xf32>
    %112 = vector.broadcast %111 : vector<1x1024xf32> to vector<8x1024xf32>
    %113 = arith.mulf %110, %112 : vector<8x1024xf32>
    %c1015_i32_28 = arith.constant 1015 : i32
    %114 = tpu.dynamic_rotate %85 by %c1015_i32_28 dim 1 : vector<8x1024xf32>, i32 -> vector<8x1024xf32>
    %115 = vector.extract_strided_slice %2 {offsets = [8, 0], sizes = [1, 1024], strides = [1, 1]} : vector<9x1024xf32> to vector<1x1024xf32>
    %116 = vector.broadcast %115 : vector<1x1024xf32> to vector<8x1024xf32>
    %117 = arith.mulf %114, %116 : vector<8x1024xf32>
    %118 = tpu.concatenate %89, %93, %97, %101, %85, %105, %109, %113, %117 in 0 : vector<8x1024xf32>, vector<8x1024xf32>, vector<8x1024xf32>, vector<8x1024xf32>, vector<8x1024xf32>, vector<8x1024xf32>, vector<8x1024xf32>, vector<8x1024xf32>, vector<8x1024xf32> -> vector<72x1024xf32>
    %119 = tpu.concatenate %118, %35 in 0 : vector<72x1024xf32>, vector<27x1024xf32> -> vector<99x1024xf32>
    %c0_29 = arith.constant 0 : index
    %c256 = arith.constant 256 : index
    %120 = vector.load %arg3[%c0_29, %c256] : memref<8x512xbf16, #tpu.memory_space<vmem>>, vector<8x99xbf16>
    %121 = arith.truncf %119 : vector<99x1024xf32> to vector<99x1024xbf16>
    %cst_30 = arith.constant dense<0.000000e+00> : vector<8x1024xf32>
    %122 = tpu.matmul %120, %121, %cst_30 {dimension_numbers = #tpu.dot_dimension_numbers<[1], [0], [0], [1], [0, 0, 1, 1], [], []>} : vector<8x99xbf16>, vector<99x1024xbf16>, vector<8x1024xf32> -> vector<8x1024xf32>
    %c16 = arith.constant 16 : index
    %c0_31 = arith.constant 0 : index
    %123 = vector.load %arg5[%c16, %c0_31] : memref<80x1xf32, #tpu.memory_space<vmem>>, vector<8x1xf32>
    %124 = vector.broadcast %123 : vector<8x1xf32> to vector<8x1024xf32>
    %125 = arith.addf %122, %124 : vector<8x1024xf32>
    %cst_32 = arith.constant 0.000000e+00 : f32
    %126 = vector.broadcast %cst_32 : f32 to vector<8x1024xf32>
    %127 = arith.maximumf %125, %126 : vector<8x1024xf32>
    %128 = tpu.concatenate %85, %127, %1 in 0 : vector<8x1024xf32>, vector<8x1024xf32>, vector<3x1024xf32> -> vector<19x1024xf32>
    %129 = vector.extract_strided_slice %128 {offsets = [0, 0], sizes = [19, 256], strides = [1, 1]} : vector<19x1024xf32> to vector<19x256xf32>
    %130 = vector.extract_strided_slice %128 {offsets = [0, 256], sizes = [19, 256], strides = [1, 1]} : vector<19x1024xf32> to vector<19x256xf32>
    %131 = vector.extract_strided_slice %128 {offsets = [0, 512], sizes = [19, 256], strides = [1, 1]} : vector<19x1024xf32> to vector<19x256xf32>
    %132 = vector.extract_strided_slice %128 {offsets = [0, 768], sizes = [19, 256], strides = [1, 1]} : vector<19x1024xf32> to vector<19x256xf32>
    %133 = tpu.concatenate %129, %130, %131, %132 in 0 : vector<19x256xf32>, vector<19x256xf32>, vector<19x256xf32>, vector<19x256xf32> -> vector<76x256xf32>
    %c0_33 = arith.constant 0 : index
    %c384 = arith.constant 384 : index
    %134 = vector.load %arg3[%c0_33, %c384] : memref<8x512xbf16, #tpu.memory_space<vmem>>, vector<8x76xbf16>
    %135 = arith.truncf %133 : vector<76x256xf32> to vector<76x256xbf16>
    %cst_34 = arith.constant dense<0.000000e+00> : vector<8x256xf32>
    %136 = tpu.matmul %134, %135, %cst_34 {dimension_numbers = #tpu.dot_dimension_numbers<[1], [0], [0], [1], [0, 0, 1, 1], [], []>} : vector<8x76xbf16>, vector<76x256xbf16>, vector<8x256xf32> -> vector<8x256xf32>
    %c24 = arith.constant 24 : index
    %c0_35 = arith.constant 0 : index
    %137 = vector.load %arg5[%c24, %c0_35] : memref<80x1xf32, #tpu.memory_space<vmem>>, vector<8x1xf32>
    %138 = vector.broadcast %137 : vector<8x1xf32> to vector<8x256xf32>
    %139 = arith.addf %136, %138 : vector<8x256xf32>
    %cst_36 = arith.constant 0.000000e+00 : f32
    %140 = vector.broadcast %cst_36 : f32 to vector<8x256xf32>
    %141 = arith.maximumf %139, %140 : vector<8x256xf32>
    %c0_37 = arith.constant 0 : index
    %c0_38 = arith.constant 0 : index
    %142 = vector.load %arg4[%c0_37, %c0_38] : memref<48x8xbf16, #tpu.memory_space<vmem>>, vector<48x8xbf16>
    %143 = arith.truncf %141 : vector<8x256xf32> to vector<8x256xbf16>
    %cst_39 = arith.constant dense<0.000000e+00> : vector<48x256xf32>
    %144 = tpu.matmul %142, %143, %cst_39 {dimension_numbers = #tpu.dot_dimension_numbers<[1], [0], [0], [1], [0, 0, 1, 1], [], []>} : vector<48x8xbf16>, vector<8x256xbf16>, vector<48x256xf32> -> vector<48x256xf32>
    %c32 = arith.constant 32 : index
    %c0_40 = arith.constant 0 : index
    %145 = vector.load %arg5[%c32, %c0_40] : memref<80x1xf32, #tpu.memory_space<vmem>>, vector<48x1xf32>
    %146 = vector.broadcast %145 : vector<48x1xf32> to vector<48x256xf32>
    %147 = arith.addf %144, %146 : vector<48x256xf32>
    %c0_41 = arith.constant 0 : index
    %c0_42 = arith.constant 0 : index
    %c0_43 = arith.constant 0 : index
    %148 = vector.load %arg6[%c0_41, %c0_42, %c0_43] : memref<1x48x256xf32, #tpu.memory_space<vmem>>, vector<1x48x256xf32>
    %149 = vector.shape_cast %148 : vector<1x48x256xf32> to vector<48x256xf32>
    %150 = vector.shape_cast %147 : vector<48x256xf32> to vector<1x48x256xf32>
    tpu.vector_store %arg6[%c0_41, %c0_42, %c0_43], %150 {strides = array<i32>} : memref<1x48x256xf32, #tpu.memory_space<vmem>>, vector<1x48x256xf32>,
    return
  }
  func.func @transform_0(%arg0: i32) -> (i32, i32, i32) {
    %c0_i32 = arith.constant 0 : i32
    %c0_i32_0 = arith.constant 0 : i32
    %c0_i32_1 = arith.constant 0 : i32
    return %arg0, %c0_i32, %c0_i32_0 : i32, i32, i32
  }
  func.func @transform_1(%arg0: i32) -> (i32, i32) {
    %c0_i32 = arith.constant 0 : i32
    %c0_i32_0 = arith.constant 0 : i32
    %c0_i32_1 = arith.constant 0 : i32
    return %c0_i32, %c0_i32_0 : i32, i32
  }
  func.func @transform_2(%arg0: i32) -> (i32, i32) {
    %c0_i32 = arith.constant 0 : i32
    %c0_i32_0 = arith.constant 0 : i32
    %c0_i32_1 = arith.constant 0 : i32
    return %c0_i32, %c0_i32_0 : i32, i32
  }
  func.func @transform_3(%arg0: i32) -> (i32, i32) {
    %c0_i32 = arith.constant 0 : i32
    %c0_i32_0 = arith.constant 0 : i32
    %c0_i32_1 = arith.constant 0 : i32
    return %c0_i32, %c0_i32_0 : i32, i32
  }
  func.func @transform_4(%arg0: i32) -> (i32, i32) {
    %c0_i32 = arith.constant 0 : i32
    %c0_i32_0 = arith.constant 0 : i32
    %c0_i32_1 = arith.constant 0 : i32
    return %c0_i32, %c0_i32_0 : i32, i32
  }
  func.func @transform_5(%arg0: i32) -> (i32, i32, i32) {
    %c0_i32 = arith.constant 0 : i32
    %c0_i32_0 = arith.constant 0 : i32
    %c0_i32_1 = arith.constant 0 : i32
    return %arg0, %c0_i32, %c0_i32_0 : i32, i32, i32
  }
}

</mosaic_0001>

<llo_original>
// kernel: tile.9
$region0: #{tile.9}
  %s0 = inlined_call_operand.vmem [shape: f32[9,16,64], index: 0, kind: input, shape index: {}]
  %s1 = inlined_call_operand.vmem [shape: f32[9,1024], index: 1, kind: output, shape index: {}]
  %v2 = vld [vmem:[%s0] ss:$2 sm:$0xff]
  %vm3 = vcmask 523264
  %4 = vst.msk [vmem:[%s1] ss:$8 sm:$0xf] %vm3, %v2
  %5 = vst.msk [vmem:[%s1] ss:$8 sm:$0xf0] %vm3, %v2
  %s6 = scalar_lea.vmem %s0, 16
  %v7 = vld [vmem:[%s6] ss:$2 sm:$0xff]
  %vm8 = vcmask 523264
  %s9 = scalar_lea.vmem %s1, 1
  %10 = vst.msk [vmem:[%s9] ss:$8 sm:$0xf] %vm8, %v7
  %s11 = scalar_lea.vmem %s1, 1
  %12 = vst.msk [vmem:[%s11] ss:$8 sm:$0xf0] %vm8, %v7
  %s13 = scalar_lea.vmem %s0, 32
  %v14 = vld [vmem:[%s13] ss:$2 sm:$0xff]
  %vm15 = vcmask 523264
  %s16 = scalar_lea.vmem %s1, 2
  %17 = vst.msk [vmem:[%s16] ss:$8 sm:$0xf] %vm15, %v14
  %s18 = scalar_lea.vmem %s1, 2
  %19 = vst.msk [vmem:[%s18] ss:$8 sm:$0xf0] %vm15, %v14
  %s20 = scalar_lea.vmem %s0, 48
  %v21 = vld [vmem:[%s20] ss:$2 sm:$0xff]
  %vm22 = vcmask 523264
  %s23 = scalar_lea.vmem %s1, 3
  %24 = vst.msk [vmem:[%s23] ss:$8 sm:$0xf] %vm22, %v21
  %s25 = scalar_lea.vmem %s1, 3
  %26 = vst.msk [vmem:[%s25] ss:$8 sm:$0xf0] %vm22, %v21
  %s27 = scalar_lea.vmem %s0, 64
  %v28 = vld [vmem:[%s27] ss:$2 sm:$0xff]
  %vm29 = vcmask 523264
  %s30 = scalar_lea.vmem %s1, 4
  %31 = vst.msk [vmem:[%s30] ss:$8 sm:$0xf] %vm29, %v28
  %s32 = scalar_lea.vmem %s1, 4
  %33 = vst.msk [vmem:[%s32] ss:$8 sm:$0xf0] %vm29, %v28
  %s34 = scalar_lea.vmem %s0, 80
  %v35 = vld [vmem:[%s34] ss:$2 sm:$0xff]
  %vm36 = vcmask 523264
  %s37 = scalar_lea.vmem %s1, 5
  %38 = vst.msk [vmem:[%s37] ss:$8 sm:$0xf] %vm36, %v35
  %s39 = scalar_lea.vmem %s1, 5
  %40 = vst.msk [vmem:[%s39] ss:$8 sm:$0xf0] %vm36, %v35
  %s41 = scalar_lea.vmem %s0, 96
  %v42 = vld [vmem:[%s41] ss:$2 sm:$0xff]
  %vm43 = vcmask 523264
  %s44 = scalar_lea.vmem %s1, 6
  %45 = vst.msk [vmem:[%s44] ss:$8 sm:$0xf] %vm43, %v42
  %s46 = scalar_lea.vmem %s1, 6
  %47 = vst.msk [vmem:[%s46] ss:$8 sm:$0xf0] %vm43, %v42
  %s48 = scalar_lea.vmem %s0, 112
  %v49 = vld [vmem:[%s48] ss:$2 sm:$0xff]
  %vm50 = vcmask 523264
  %s51 = scalar_lea.vmem %s1, 7
  %52 = vst.msk [vmem:[%s51] ss:$8 sm:$0xf] %vm50, %v49
  %s53 = scalar_lea.vmem %s1, 7
  %54 = vst.msk [vmem:[%s53] ss:$8 sm:$0xf0] %vm50, %v49
  %s55 = scalar_lea.vmem %s0, 128
  %v56 = vld [vmem:[%s55] ss:$2 sm:$0xff]
  %vm57 = vcmask 523264
  %s58 = scalar_lea.vmem %s1, 64
  %59 = vst.msk [vmem:[%s58] ss:$8 sm:$0xf] %vm57, %v56
  %s60 = scalar_lea.vmem %s1, 64
  %61 = vst.msk [vmem:[%s60] ss:$8 sm:$0xf0] %vm57, %v56
  %s62 = scalar_lea.vmem %s0, 1
  %s63 = smov 3
  %v64 = vld [vmem:[%s62] ss:$16 sm:%s63]
  %s65 = scalar_lea.vmem %s0, 1
  %s66 = smov 12
  %v67 = vld [vmem:[%s65] ss:$16 sm:%s66]
  %vm68 = vcmask 1043458
  %v69 = vsel %vm68, %v67, %v64
  %s70 = scalar_lea.vmem %s0, 1
  %s71 = smov 48
  %v72 = vld [vmem:[%s70] ss:$16 sm:%s71]
  %vm73 = vcmask 1045508
  %v74 = vsel %vm73, %v72, %v69
  %s75 = scalar_lea.vmem %s0, 1
  %s76 = smov 192
  %v77 = vld [vmem:[%s75] ss:$16 sm:%s76]
  %vm78 = vcmask 1047558
  %v79 = vsel %vm78, %v77, %v74
  %80 = vrot.lane.b32.xlu0 %v79, 64
  %v81 = vpop.permute.xlu0 %80
  %vm82 = vcmask 1048064
  %83 = vst.msk [vmem:[%s1] sm:$0xff] %vm82, %v81
  %s84 = scalar_lea.vmem %s0, 9
  %s85 = smov 3
  %v86 = vld [vmem:[%s84] ss:$16 sm:%s85]
  %s87 = scalar_lea.vmem %s0, 9
  %s88 = smov 12
  %v89 = vld [vmem:[%s87] ss:$16 sm:%s88]
  %vm90 = vcmask 1043458
  %v91 = vsel %vm90, %v89, %v86
  %s92 = scalar_lea.vmem %s0, 9
  %s93 = smov 48
  %v94 = vld [vmem:[%s92] ss:$16 sm:%s93]
  %vm95 = vcmask 1045508
  %v96 = vsel %vm95, %v94, %v91
  %s97 = scalar_lea.vmem %s0, 9
  %s98 = smov 192
  %v99 = vld [vmem:[%s97] ss:$16 sm:%s98]
  %vm100 = vcmask 1047558
  %v101 = vsel %vm100, %v99, %v96
  %102 = vrot.lane.b32.xlu0 %v101, 64
  %v103 = vpop.permute.xlu0 %102
  %vm104 = vcmask 1048064
  %s105 = scalar_lea.vmem %s1, 32
  %106 = vst.msk [vmem:[%s105] sm:$0xff] %vm104, %v103
  %s107 = scalar_lea.vmem %s0, 129
  %s108 = smov 3
  %v109 = vld [vmem:[%s107] ss:$-126 sm:%s108]
  %s110 = scalar_lea.vmem %s0, 4294967283
  %s111 = smov 12
  %v112 = vld [vmem:[%s110] ss:$16 sm:%s111]
  %vm113 = vcmask 1043458
  %v114 = vsel %vm113, %v112, %v109
  %s115 = scalar_lea.vmem %s0, 4294967283
  %s116 = smov 48
  %v117 = vld [vmem:[%s115] ss:$16 sm:%s116]
  %vm118 = vcmask 1045508
  %v119 = vsel %vm118, %v117, %v114
  %s120 = scalar_lea.vmem %s0, 4294967283
  %s121 = smov 192
  %v122 = vld [vmem:[%s120] ss:$16 sm:%s121]
  %vm123 = vcmask 1047558
  %v124 = vsel %vm123, %v122, %v119
  %125 = vrot.lane.b32.xlu0 %v124, 64
  %v126 = vpop.permute.xlu0 %125
  %vm127 = vcmask 1048064
  %s128 = scalar_lea.vmem %s1, 64
  %129 = vst.msk [vmem:[%s128] ss:$-56 sm:$0x3] %vm127, %v126
  %s130 = scalar_lea.vmem %s1, 7
  %131 = vst.msk [vmem:[%s130] sm:$0xfc] %vm127, %v126
  %s132 = scalar_lea.vmem %s0, 137
  %s133 = smov 3
  %v134 = vld [vmem:[%s132] ss:$-126 sm:%s133]
  %s135 = scalar_lea.vmem %s0, 4294967291
  %s136 = smov 12
  %v137 = vld [vmem:[%s135] ss:$16 sm:%s136]
  %vm138 = vcmask 1043458
  %v139 = vsel %vm138, %v137, %v134
  %s140 = scalar_lea.vmem %s0, 4294967291
  %s141 = smov 48
  %v142 = vld [vmem:[%s140] ss:$16 sm:%s141]
  %vm143 = vcmask 1045508
  %v144 = vsel %vm143, %v142, %v139
  %s145 = scalar_lea.vmem %s0, 4294967291
  %s146 = smov 192
  %v147 = vld [vmem:[%s145] ss:$16 sm:%s146]
  %vm148 = vcmask 1047558
  %v149 = vsel %vm148, %v147, %v144
  %150 = vrot.lane.b32.xlu0 %v149, 64
  %v151 = vpop.permute.xlu0 %150
  %vm152 = vcmask 1048064
  %s153 = scalar_lea.vmem %s1, 96
  %154 = vst.msk [vmem:[%s153] ss:$-56 sm:$0x3] %vm152, %v151
  %s155 = scalar_lea.vmem %s1, 39
  %156 = vst.msk [vmem:[%s155] sm:$0xfc] %vm152, %v151
  %s157 = scalar_lea.vmem %s0, 131
  %s158 = smov 3
  %v159 = vld [vmem:[%s157] ss:$-16 sm:%s158]
  %s160 = scalar_lea.vmem %s0, 4294967269
  %s161 = smov 12
  %v162 = vld [vmem:[%s160] ss:$16 sm:%s161]
  %vm163 = vcmask 1043458
  %v164 = vsel %vm163, %v162, %v159
  %s165 = scalar_lea.vmem %s0, 4294967269
  %s166 = smov 48
  %v167 = vld [vmem:[%s165] ss:$16 sm:%s166]
  %vm168 = vcmask 1045508
  %v169 = vsel %vm168, %v167, %v164
  %s170 = scalar_lea.vmem %s0, 4294967269
  %s171 = smov 192
  %v172 = vld [vmem:[%s170] ss:$16 sm:%s171]
  %vm173 = vcmask 1047558
  %v174 = vsel %vm173, %v172, %v169
  %175 = vrot.lane.b32.xlu0 %v174, 64
  %v176 = vpop.permute.xlu0 %175
  %vm177 = vcmask 1048064
  %s178 = scalar_lea.vmem %s1, 72
  %179 = vst.msk [vmem:[%s178] ss:$-57 sm:$0x3] %vm177, %v176
  %s180 = scalar_lea.vmem %s1, 14
  %181 = vst.msk [vmem:[%s180] sm:$0xfc] %vm177, %v176
  %s182 = scalar_lea.vmem %s0, 139
  %s183 = smov 3
  %v184 = vld [vmem:[%s182] ss:$-16 sm:%s183]
  %s185 = scalar_lea.vmem %s0, 4294967277
  %s186 = smov 12
  %v187 = vld [vmem:[%s185] ss:$16 sm:%s186]
  %vm188 = vcmask 1043458
  %v189 = vsel %vm188, %v187, %v184
  %s190 = scalar_lea.vmem %s0, 4294967277
  %s191 = smov 48
  %v192 = vld [vmem:[%s190] ss:$16 sm:%s191]
  %vm193 = vcmask 1045508
  %v194 = vsel %vm193, %v192, %v189
  %s195 = scalar_lea.vmem %s0, 4294967277
  %s196 = smov 192
  %v197 = vld [vmem:[%s195] ss:$16 sm:%s196]
  %vm198 = vcmask 1047558
  %v199 = vsel %vm198, %v197, %v194
  %200 = vrot.lane.b32.xlu0 %v199, 64
  %v201 = vpop.permute.xlu0 %200
  %vm202 = vcmask 1048064
  %s203 = scalar_lea.vmem %s1, 104
  %204 = vst.msk [vmem:[%s203] ss:$-57 sm:$0x3] %vm202, %v201
  %s205 = scalar_lea.vmem %s1, 46
  %206 = vst.msk [vmem:[%s205] sm:$0xfc] %vm202, %v201
  %s207 = scalar_lea.vmem %s0, 133
  %v208 = vld [vmem:[%s207] sm:$0x1]
  %s209 = scalar_lea.vmem %s0, 85
  %s210 = smov 6
  %v211 = vld [vmem:[%s209] ss:$16 sm:%s210]
  %vm212 = vcmask 1042433
  %v213 = vsel %vm212, %v211, %v208
  %s214 = scalar_lea.vmem %s0, 4294967255
  %s215 = smov 24
  %v216 = vld [vmem:[%s214] ss:$16 sm:%s215]
  %vm217 = vcmask 1044483
  %v218 = vsel %vm217, %v216, %v213
  %s219 = scalar_lea.vmem %s0, 4294967255
  %s220 = smov 96
  %v221 = vld [vmem:[%s219] ss:$16 sm:%s220]
  %vm222 = vcmask 1046533
  %v223 = vsel %vm222, %v221, %v218
  %s224 = scalar_lea.vmem %s0, 64
  %v225 = vld [vmem:[%s224] sm:$0x80]
  %vm226 = vcmask 1047559
  %v227 = vsel %vm226, %v225, %v223
  %228 = vrot.lane.b32.xlu0 %v227, 64
  %v229 = vpop.permute.xlu0 %228
  %vm230 = vcmask 1048064
  %s231 = scalar_lea.vmem %s1, 80
  %232 = vst.msk [vmem:[%s231] ss:$-58 sm:$0x3] %vm230, %v229
  %s233 = scalar_lea.vmem %s1, 21
  %234 = vst.msk [vmem:[%s233] sm:$0xfc] %vm230, %v229
  %s235 = scalar_lea.vmem %s0, 141
  %v236 = vld [vmem:[%s235] sm:$0x1]
  %s237 = scalar_lea.vmem %s0, 93
  %s238 = smov 6
  %v239 = vld [vmem:[%s237] ss:$16 sm:%s238]
  %vm240 = vcmask 1042433
  %v241 = vsel %vm240, %v239, %v236
  %s242 = scalar_lea.vmem %s0, 4294967263
  %s243 = smov 24
  %v244 = vld [vmem:[%s242] ss:$16 sm:%s243]
  %vm245 = vcmask 1044483
  %v246 = vsel %vm245, %v244, %v241
  %s247 = scalar_lea.vmem %s0, 4294967263
  %s248 = smov 96
  %v249 = vld [vmem:[%s247] ss:$16 sm:%s248]
  %vm250 = vcmask 1046533
  %v251 = vsel %vm250, %v249, %v246
  %s252 = scalar_lea.vmem %s0, 72
  %v253 = vld [vmem:[%s252] sm:$0x80]
  %vm254 = vcmask 1047559
  %v255 = vsel %vm254, %v253, %v251
  %256 = vrot.lane.b32.xlu0 %v255, 64
  %v257 = vpop.permute.xlu0 %256
  %vm258 = vcmask 1048064
  %s259 = scalar_lea.vmem %s1, 112
  %260 = vst.msk [vmem:[%s259] ss:$-58 sm:$0x3] %vm258, %v257
  %s261 = scalar_lea.vmem %s1, 53
  %262 = vst.msk [vmem:[%s261] sm:$0xfc] %vm258, %v257
  %s263 = scalar_lea.vmem %s0, 135
  %s264 = smov 3
  %v265 = vld [vmem:[%s263] ss:$-48 sm:%s264]
  %s266 = scalar_lea.vmem %s0, 71
  %s267 = smov 12
  %v268 = vld [vmem:[%s266] ss:$16 sm:%s267]
  %vm269 = vcmask 1043458
  %v270 = vsel %vm269, %v268, %v265
  %s271 = scalar_lea.vmem %s0, 335
  %s272 = smov 48
  %v273 = vld [vmem:[%s271] ss:$-48 sm:%s272]
  %vm274 = vcmask 1045508
  %v275 = vsel %vm274, %v273, %v270
  %s276 = scalar_lea.vmem %s0, 15
  %s277 = smov 192
  %v278 = vld [vmem:[%s276] ss:$16 sm:%s277]
  %vm279 = vcmask 1047558
  %v280 = vsel %vm279, %v278, %v275
  %281 = vrot.lane.b32.xlu0 %v280, 64
  %v282 = vpop.permute.xlu0 %281
  %vm283 = vcmask 1048064
  %s284 = scalar_lea.vmem %s1, 88
  %285 = vst.msk [vmem:[%s284] ss:$-59 sm:$0x3] %vm283, %v282
  %s286 = scalar_lea.vmem %s1, 28
  %287 = vst.msk [vmem:[%s286] sm:$0xc] %vm283, %v282
  %s288 = scalar_lea.vmem %s1, 356
  %289 = vst.msk [vmem:[%s288] ss:$-59 sm:$0x30] %vm283, %v282
  %s290 = scalar_lea.vmem %s1, 56
  %291 = vst.msk [vmem:[%s290] sm:$0xc0] %vm283, %v282

// kernel: dknet_forward.1
$region0: #{dknet_forward.1}
  #allocation0 [shape = 'u32[]', space=smem, size = 0x4, offset = 0x4, fixed_abs, tag = 'smem constant byte address 0x4 - core index']
  #allocation1 [shape = 'u32[144,128]{1,0:T(1,128)}', space=vmem, size = 0x12000, scoped, tag = 'internal scratch']
  %s0 = inlined_call_operand.vmem [shape: f32[2,3,1024], index: 0, kind: input, shape index: {}]
  %s1 = inlined_call_operand.vmem [shape: f32[9,1024], index: 1, kind: input, shape index: {}]
  %s2 = inlined_call_operand.hbm [shape: bf16[8,512], index: 2, kind: input, shape index: {}]
  %s3 = inlined_call_operand.vmem [shape: bf16[48,8], index: 3, kind: input, shape index: {}]
  %s4 = inlined_call_operand.vmem [shape: f32[80,1], index: 4, kind: input, shape index: {}]
  %s5 = inlined_call_operand.vmem [shape: f32[2,48,256], index: 5, kind: output, shape index: {}]
  %s6 = sld [smem:[#allocation0]]
  $region57: #{dknet_forward.1} parent=0
    _
  %s8 = ssub.s32 1, %s6
  %s9 = scalar_select 0, %s8, %s6
  $region1: #{dknet_forward.1} parent=0
    #allocation2 [shape = 'u8[8192]{0}', space=vmem, size = 0x2000, scoped, tag = 'input window, operand 2, single buffered']
    #allocation3 [shape = 's32[2]{0}', space=sflag, size = 0x8, scoped, tag = 'scoped memory for dknet_forward.1']
    %10 = vsyncpa [#allocation3], 0
    loop: start=0, step=1, limit=4
    $region2: #{dknet_forward.1} parent=1 // loop_pre_header
      _
    $region3: #{dknet_forward.1} parent=1 // loop_header
      %s12 = sphi 0, %s16
      %p13 = scmp.ge.s32.totalorder %s12, 4
      %s22 = sphi 0, %s24
      %s25 = sphi 0, %s22
      %s26 = sphi 0, %s25
      %s42 = sphi 0, %s26
      %s46 = sphi 0, %s46
      %s48 = sphi 0, %s46
      %s49 = sphi 0, %s48
      %s63 = sphi 0, %s49
      %s67 = sphi 0, %s67
      %s69 = sphi 0, %s67
      %s70 = sphi 0, %s69
      %s84 = sphi 0, %s70
      %s88 = sphi 0, %s88
      %s90 = sphi 0, %s88
      %s91 = sphi 0, %s90
      %s105 = sphi 0, %s91
      %s109 = sphi 0, %s109
      %s111 = sphi 0, %s109
      %s112 = sphi 0, %s111
      %s126 = sphi 0, %s112
      %s132 = sphi 0, %s134
      %s135 = sphi 0, %s132
      %s136 = sphi 0, %s135
      %s152 = sphi 0, %s136
    $region4: #{dknet_forward.1} parent=1 // loop_header_branch
      %15 = sbr.rel (%p13) target = $region8
    $region5: #{dknet_forward.1} parent=1 // loop_body
      %s17 = ssub.s32 %s12, 1
      %s18 = ssub.s32 %s12, 2
      %s19 = sadd.s32 %s12, 1
      %s20 = ssub.s32 %s12, %s19
      %p21 = scmp.eq.s32.totalorder %s20, 0
      %s23 = sadd.s32 %s22, 1
      %s24 = scalar_select %p21, %s22, %s23
      %p27 = pneg %p21
      %p28 = scmp.eq.s32.totalorder %s12, 1
      %p29 = por %p27, %p28
      %p30 = scmp.ne.s32.totalorder %s22, %s25
      %p31 = scmp.eq.s32.totalorder %s12, 0
      %p32 = por %p30, %p31
      %p33 = scmp.ne.s32.totalorder %s22, %s25
      %p34 = scmp.eq.s32.totalorder %s17, 1
      %p35 = por %p33, %p34
      %p36 = scmp.ne.s32.totalorder %s25, %s26
      %p37 = scmp.eq.s32.totalorder %s17, 0
      %p38 = por %p36, %p37
      %p39 = scmp.ne.s32.totalorder %s25, %s26
      %p40 = scmp.eq.s32.totalorder %s18, 1
      %p41 = por %p39, %p40
      %p43 = scmp.ne.s32.totalorder %s26, %s42
      %p44 = scmp.eq.s32.totalorder %s18, 0
      %p45 = por %p43, %p44
      %s47 = sadd.s32 %s46, 1
      %p50 = scmp.eq.s32.totalorder %s12, 1
      %p51 = scmp.ne.s32.totalorder %s46, %s48
      %p52 = scmp.eq.s32.totalorder %s12, 0
      %p53 = por %p51, %p52
      %p54 = scmp.ne.s32.totalorder %s46, %s48
      %p55 = scmp.eq.s32.totalorder %s17, 1
      %p56 = por %p54, %p55
      %p57 = scmp.ne.s32.totalorder %s48, %s49
      %p58 = scmp.eq.s32.totalorder %s17, 0
      %p59 = por %p57, %p58
      %p60 = scmp.ne.s32.totalorder %s48, %s49
      %p61 = scmp.eq.s32.totalorder %s18, 1
      %p62 = por %p60, %p61
      %p64 = scmp.ne.s32.totalorder %s49, %s63
      %p65 = scmp.eq.s32.totalorder %s18, 0
      %p66 = por %p64, %p65
      %s68 = sadd.s32 %s67, 1
      %p71 = scmp.eq.s32.totalorder %s12, 1
      %p72 = scmp.ne.s32.totalorder %s67, %s69
      %p73 = scmp.eq.s32.totalorder %s12, 0
      %p74 = por %p72, %p73
      %p75 = scmp.ne.s32.totalorder %s67, %s69
      %p76 = scmp.eq.s32.totalorder %s17, 1
      %p77 = por %p75, %p76
      %p78 = scmp.ne.s32.totalorder %s69, %s70
      %p79 = scmp.eq.s32.totalorder %s17, 0
      %p80 = por %p78, %p79
      %p81 = scmp.ne.s32.totalorder %s69, %s70
      %p82 = scmp.eq.s32.totalorder %s18, 1
      %p83 = por %p81, %p82
      %p85 = scmp.ne.s32.totalorder %s70, %s84
      %p86 = scmp.eq.s32.totalorder %s18, 0
      %p87 = por %p85, %p86
      %s89 = sadd.s32 %s88, 1
      %p92 = scmp.eq.s32.totalorder %s12, 1
      %p93 = scmp.ne.s32.totalorder %s88, %s90
      %p94 = scmp.eq.s32.totalorder %s12, 0
      %p95 = por %p93, %p94
      %p96 = scmp.ne.s32.totalorder %s88, %s90
      %p97 = scmp.eq.s32.totalorder %s17, 1
      %p98 = por %p96, %p97
      %p99 = scmp.ne.s32.totalorder %s90, %s91
      %p100 = scmp.eq.s32.totalorder %s17, 0
      %p101 = por %p99, %p100
      %p102 = scmp.ne.s32.totalorder %s90, %s91
      %p103 = scmp.eq.s32.totalorder %s18, 1
      %p104 = por %p102, %p103
      %p106 = scmp.ne.s32.totalorder %s91, %s105
      %p107 = scmp.eq.s32.totalorder %s18, 0
      %p108 = por %p106, %p107
      %s110 = sadd.s32 %s109, 1
      %p113 = scmp.eq.s32.totalorder %s12, 1
      %p114 = scmp.ne.s32.totalorder %s109, %s111
      %p115 = scmp.eq.s32.totalorder %s12, 0
      %p116 = por %p114, %p115
      %p117 = scmp.ne.s32.totalorder %s109, %s111
      %p118 = scmp.eq.s32.totalorder %s17, 1
      %p119 = por %p117, %p118
      %p120 = scmp.ne.s32.totalorder %s111, %s112
      %p121 = scmp.eq.s32.totalorder %s17, 0
      %p122 = por %p120, %p121
      %p123 = scmp.ne.s32.totalorder %s111, %s112
      %p124 = scmp.eq.s32.totalorder %s18, 1
      %p125 = por %p123, %p124
      %p127 = scmp.ne.s32.totalorder %s112, %s126
      %p128 = scmp.eq.s32.totalorder %s18, 0
      %p129 = por %p127, %p128
      %s130 = ssub.s32 %s12, %s19
      %p131 = scmp.eq.s32.totalorder %s130, 0
      %s133 = sadd.s32 %s132, 1
      %s134 = scalar_select %p131, %s132, %s133
      %p137 = pneg %p131
      %p138 = scmp.eq.s32.totalorder %s12, 1
      %p139 = por %p137, %p138
      %p140 = scmp.ne.s32.totalorder %s132, %s135
      %p141 = scmp.eq.s32.totalorder %s12, 0
      %p142 = por %p140, %p141
      %p143 = scmp.ne.s32.totalorder %s132, %s135
      %p144 = scmp.eq.s32.totalorder %s17, 1
      %p145 = por %p143, %p144
      %p146 = scmp.ne.s32.totalorder %s135, %s136
      %p147 = scmp.eq.s32.totalorder %s17, 0
      %p148 = por %p146, %p147
      %p149 = scmp.ne.s32.totalorder %s135, %s136
      %p150 = scmp.eq.s32.totalorder %s18, 1
      %p151 = por %p149, %p150
      %p153 = scmp.ne.s32.totalorder %s136, %s152
      %p154 = scmp.eq.s32.totalorder %s18, 0
      %p155 = por %p153, %p154
      %p156 = scmp.le.s32.totalorder 1, %s12
      %p157 = scmp.lt.s32.totalorder %s12, 3
      %p158 = pnand %p156, %p157
      %p159 = pneg %p158
      // Predicated region
      $region9: #{dknet_forward.1} parent=5 // pred_check
        _
      $region10: #{dknet_forward.1} parent=5 // pred_check_branch
        %161 = sbr.rel (%p158) target = $region12
      $region11: #{dknet_forward.1} parent=5 // pred_region
        %s162 = ssub.s32 %s12, 1
        // Predicated region
        $region13: #{dknet_forward.1} parent=11 // pred_check
          %p163 = pneg %p59
        $region14: #{dknet_forward.1} parent=11 // pred_check_branch
          %165 = sbr.rel (%p163) target = $region16
        $region15: #{dknet_forward.1} parent=11 // pred_region
          _
        $region16: #{dknet_forward.1} parent=11 // pred_fallthru
          _
        // Predicated region
        $region17: #{dknet_forward.1} parent=11 // pred_check
          %p166 = pneg %p80
        $region18: #{dknet_forward.1} parent=11 // pred_check_branch
          %168 = sbr.rel (%p166) target = $region20
        $region19: #{dknet_forward.1} parent=11 // pred_region
          %s170 = ssub.s32 256, 256
          %171 = vsyncadd [#allocation3], %s170
          %s173 = sshll.u32 [#allocation2], 4
          %s174 = int_to_ptr.vmem [resolvable:$true] %s173
          %176 = dma.hbm_to_vmem [thread:$0]  %s2, 256, %s174, [#allocation3]
        $region20: #{dknet_forward.1} parent=11 // pred_fallthru
          _
        // Predicated region
        $region21: #{dknet_forward.1} parent=11 // pred_check
          %p177 = pneg %p101
        $region22: #{dknet_forward.1} parent=11 // pred_check_branch
          %179 = sbr.rel (%p177) target = $region24
        $region23: #{dknet_forward.1} parent=11 // pred_region
          _
        $region24: #{dknet_forward.1} parent=11 // pred_fallthru
          _
        // Predicated region
        $region25: #{dknet_forward.1} parent=11 // pred_check
          %p180 = pneg %p122
        $region26: #{dknet_forward.1} parent=11 // pred_check_branch
          %182 = sbr.rel (%p180) target = $region28
        $region27: #{dknet_forward.1} parent=11 // pred_region
          _
        $region28: #{dknet_forward.1} parent=11 // pred_fallthru
          _
      $region12: #{dknet_forward.1} parent=5 // pred_fallthru
        _
      %p183 = scmp.lt.s32.totalorder %s12, 2
      // Predicated region
      $region29: #{dknet_forward.1} parent=5 // pred_check
        %p184 = pneg %p183
      $region30: #{dknet_forward.1} parent=5 // pred_check_branch
        %186 = sbr.rel (%p184) target = $region32
      $region31: #{dknet_forward.1} parent=5 // pred_region
        // Predicated region
        $region33: #{dknet_forward.1} parent=31 // pred_check
          %p187 = pneg %p32
        $region34: #{dknet_forward.1} parent=31 // pred_check_branch
          %189 = sbr.rel (%p187) target = $region36
        $region35: #{dknet_forward.1} parent=31 // pred_region
          %p190 = scmp.lt.s32.totalorder %s12, 1
          %s191 = scalar_select %p190, %s12, 1
          %s192 = smul.addr %s191, 8
          %s193 = smul.addr %s192, 4
          %s194 = scalar_lea.vmem %s0, %s193
        $region36: #{dknet_forward.1} parent=31 // pred_fallthru
          _
      $region32: #{dknet_forward.1} parent=5 // pred_fallthru
        _
      %p195 = scmp.le.s32.totalorder 1, %s12
      %p196 = scmp.lt.s32.totalorder %s12, 3
      %p197 = pnand %p195, %p196
      %p198 = pneg %p197
      // Predicated region
      $region37: #{dknet_forward.1} parent=5 // pred_check
        _
      $region38: #{dknet_forward.1} parent=5 // pred_check_branch
        %200 = sbr.rel (%p197) target = $region40
      $region39: #{dknet_forward.1} parent=5 // pred_region
        %s201 = ssub.s32 %s12, 1
        // Predicated region
        $region41: #{dknet_forward.1} parent=39 // pred_check
          %p202 = pneg %p80
        $region42: #{dknet_forward.1} parent=39 // pred_check_branch
          %204 = sbr.rel (%p202) target = $region44
        $region43: #{dknet_forward.1} parent=39 // pred_region
          %205 = dma.done [#allocation3], 256
        $region44: #{dknet_forward.1} parent=39 // pred_fallthru
          _
        %p206 = scmp.lt.s32.totalorder %s17, 1
        %s207 = scalar_select %p206, %s17, 1
        %s208 = smul.addr %s207, 8
        %s209 = smul.addr %s208, 4
        %s210 = scalar_lea.vmem %s0, %s209
        %p211 = pneg %p38
        %p212 = pneg %p35
        %p213 = pneg %p59
        %p214 = pneg %p56
        %p215 = pneg %p80
        %p216 = pneg %p77
        %p217 = pneg %p101
        %p218 = pneg %p98
        %p219 = pneg %p122
        %p220 = pneg %p119
        %p221 = pneg %p148
        %p222 = pneg %p145
        %p223 = scmp.lt.s32.totalorder %s17, 1
        %s224 = scalar_select %p223, %s17, 1
        %s225 = smul.addr %s224, 12
        %s226 = smul.addr %s225, 8
        %s227 = scalar_lea.vmem %s5, %s226
        %p228 = scmp.lt.s32.totalorder %s17, 1
        %s229 = scalar_select %p228, %s17, 1
        %s230 = smul.addr %s229, 8
        %s231 = smul.addr %s230, 4
        %s232 = scalar_lea.vmem %s0, %s231
        %p233 = scmp.lt.s32.totalorder %s17, 1
        %s234 = scalar_select %p233, %s17, 1
        %s235 = smul.addr %s234, 12
        %s236 = smul.addr %s235, 8
        %s237 = scalar_lea.vmem %s5, %s236
        %v239 = vld [vmem:[%s232] sm:$0x77]
        %v240 = vld [vmem:[%s232 + $0x8] sm:$0x77]
        %v241 = vld [vmem:[%s232 + $0x10] sm:$0x77]
        %v242 = vld [vmem:[%s232 + $0x18] sm:$0x77]
        %v243 = vld [vmem:[%s1] sm:$0xff]
        %v244 = vld [vmem:[%s1 + $0x8] sm:$0xff]
        %v245 = vld [vmem:[%s1 + $0x10] sm:$0xff]
        %v246 = vld [vmem:[%s1 + $0x18] sm:$0xff]
        %v247 = vld [vmem:[%s1 + $0x20] sm:$0xff]
        %v248 = vld [vmem:[%s1 + $0x28] sm:$0xff]
        %v249 = vld [vmem:[%s1 + $0x30] sm:$0xff]
        %v250 = vld [vmem:[%s1 + $0x38] sm:$0xff]
        %v251 = vld [vmem:[%s1 + $0x40] sm:$0x1]
        %v252 = vld [vmem:[%s1 + $0x48] sm:$0x1]
        %v253 = vld [vmem:[%s1 + $0x50] sm:$0x1]
        %v254 = vld [vmem:[%s1 + $0x58] sm:$0x1]
        %v255 = vld [vmem:[%s1 + $0x60] sm:$0x1]
        %v256 = vld [vmem:[%s1 + $0x68] sm:$0x1]
        %v257 = vld [vmem:[%s1 + $0x70] sm:$0x1]
        %v258 = vld [vmem:[%s1 + $0x78] sm:$0x1]
        %v263 = vcombine.high %v239, %v239
        %v264 = vcombine.high %v240, %v240
        %v265 = vcombine.high %v241, %v241
        %v266 = vcombine.high %v242, %v242
        %271 = vrot.lane.b32.xlu0 %v239, 9
        %v272 = vpop.permute.xlu0 %271
        %273 = vrot.lane.b32.xlu0 %v263, 9
        %v274 = vpop.permute.xlu0 %273
        %275 = vrot.lane.b32.xlu0 %v240, 9
        %v276 = vpop.permute.xlu0 %275
        %277 = vrot.lane.b32.xlu0 %v264, 9
        %v278 = vpop.permute.xlu0 %277
        %279 = vrot.lane.b32.xlu0 %v241, 9
        %v280 = vpop.permute.xlu0 %279
        %281 = vrot.lane.b32.xlu0 %v265, 9
        %v282 = vpop.permute.xlu0 %281
        %283 = vrot.lane.b32.xlu0 %v242, 9
        %v284 = vpop.permute.xlu0 %283
        %285 = vrot.lane.b32.xlu0 %v266, 9
        %v286 = vpop.permute.xlu0 %285
        %v287 = vlaneseq
        %v288 = vand.u32 %v287, 127
        %vm289 = vcmp.lt.s32.totalorder %v288, 9
        %v290 = vsel %vm289, %v284, %v286
        %v291 = vsel %vm289, %v282, %v284
        %v292 = vsel %vm289, %v280, %v282
        %v293 = vsel %vm289, %v278, %v280
        %v294 = vsel %vm289, %v276, %v278
        %v295 = vsel %vm289, %v274, %v276
        %v296 = vsel %vm289, %v272, %v274
        %v297 = vsel %vm289, %v286, %v272
        %v298 = vlaneseq
        %v299 = vshrl.u32 %v298, 7
        %v300 = vsub.s32 0, %v299
        %v301 = vrot.slane %v243, %v300
        %v302 = vlaneseq
        %v303 = vshrl.u32 %v302, 7
        %v304 = vsub.s32 0, %v303
        %v305 = vrot.slane %v244, %v304
        %v306 = vlaneseq
        %v307 = vshrl.u32 %v306, 7
        %v308 = vsub.s32 0, %v307
        %v309 = vrot.slane %v245, %v308
        %v310 = vlaneseq
        %v311 = vshrl.u32 %v310, 7
        %v312 = vsub.s32 0, %v311
        %v313 = vrot.slane %v246, %v312
        %v314 = vlaneseq
        %v315 = vshrl.u32 %v314, 7
        %v316 = vsub.s32 0, %v315
        %v317 = vrot.slane %v247, %v316
        %v318 = vlaneseq
        %v319 = vshrl.u32 %v318, 7
        %v320 = vsub.s32 0, %v319
        %v321 = vrot.slane %v248, %v320
        %v322 = vlaneseq
        %v323 = vshrl.u32 %v322, 7
        %v324 = vsub.s32 0, %v323
        %v325 = vrot.slane %v249, %v324
        %v326 = vlaneseq
        %v327 = vshrl.u32 %v326, 7
        %v328 = vsub.s32 0, %v327
        %v329 = vrot.slane %v250, %v328
        %v330 = vmul.f32 %v297, %v301
        %v331 = vmul.f32 %v296, %v305
        %v332 = vmul.f32 %v295, %v309
        %v333 = vmul.f32 %v294, %v313
        %v334 = vmul.f32 %v293, %v317
        %v335 = vmul.f32 %v292, %v321
        %v336 = vmul.f32 %v291, %v325
        %v337 = vmul.f32 %v290, %v329
        %338 = vrot.lane.b32.xlu0 %v239, 8
        %v339 = vpop.permute.xlu0 %338
        %340 = vrot.lane.b32.xlu0 %v263, 8
        %v341 = vpop.permute.xlu0 %340
        %342 = vrot.lane.b32.xlu0 %v240, 8
        %v343 = vpop.permute.xlu0 %342
        %344 = vrot.lane.b32.xlu0 %v264, 8
        %v345 = vpop.permute.xlu0 %344
        %346 = vrot.lane.b32.xlu0 %v241, 8
        %v347 = vpop.permute.xlu0 %346
        %348 = vrot.lane.b32.xlu0 %v265, 8
        %v349 = vpop.permute.xlu0 %348
        %350 = vrot.lane.b32.xlu0 %v242, 8
        %v351 = vpop.permute.xlu0 %350
        %352 = vrot.lane.b32.xlu0 %v266, 8
        %v353 = vpop.permute.xlu0 %352
        %vm354 = vcmp.lt.s32.totalorder %v288, 8
        %v355 = vsel %vm354, %v351, %v353
        %v356 = vsel %vm354, %v349, %v351
        %v357 = vsel %vm354, %v347, %v349
        %v358 = vsel %vm354, %v345, %v347
        %v359 = vsel %vm354, %v343, %v345
        %v360 = vsel %vm354, %v341, %v343
        %v361 = vsel %vm354, %v339, %v341
        %v362 = vsel %vm354, %v353, %v339
        %v363 = vlaneseq
        %v364 = vshrl.u32 %v363, 7
        %v365 = vsub.s32 1, %v364
        %v366 = vrot.slane %v243, %v365
        %v367 = vlaneseq
        %v368 = vshrl.u32 %v367, 7
        %v369 = vsub.s32 1, %v368
        %v370 = vrot.slane %v244, %v369
        %v371 = vlaneseq
        %v372 = vshrl.u32 %v371, 7
        %v373 = vsub.s32 1, %v372
        %v374 = vrot.slane %v245, %v373
        %v375 = vlaneseq
        %v376 = vshrl.u32 %v375, 7
        %v377 = vsub.s32 1, %v376
        %v378 = vrot.slane %v246, %v377
        %v379 = vlaneseq
        %v380 = vshrl.u32 %v379, 7
        %v381 = vsub.s32 1, %v380
        %v382 = vrot.slane %v247, %v381
        %v383 = vlaneseq
        %v384 = vshrl.u32 %v383, 7
        %v385 = vsub.s32 1, %v384
        %v386 = vrot.slane %v248, %v385
        %v387 = vlaneseq
        %v388 = vshrl.u32 %v387, 7
        %v389 = vsub.s32 1, %v388
        %v390 = vrot.slane %v249, %v389
        %v391 = vlaneseq
        %v392 = vshrl.u32 %v391, 7
        %v393 = vsub.s32 1, %v392
        %v394 = vrot.slane %v250, %v393
        %v395 = vmul.f32 %v362, %v366
        %v396 = vmul.f32 %v361, %v370
        %v397 = vmul.f32 %v360, %v374
        %v398 = vmul.f32 %v359, %v378
        %v399 = vmul.f32 %v358, %v382
        %v400 = vmul.f32 %v357, %v386
        %v401 = vmul.f32 %v356, %v390
        %v402 = vmul.f32 %v355, %v394
        %403 = vrot.lane.b32.xlu0 %v239, 7
        %v404 = vpop.permute.xlu0 %403
        %405 = vrot.lane.b32.xlu0 %v263, 7
        %v406 = vpop.permute.xlu0 %405
        %407 = vrot.lane.b32.xlu0 %v240, 7
        %v408 = vpop.permute.xlu0 %407
        %409 = vrot.lane.b32.xlu0 %v264, 7
        %v410 = vpop.permute.xlu0 %409
        %411 = vrot.lane.b32.xlu0 %v241, 7
        %v412 = vpop.permute.xlu0 %411
        %413 = vrot.lane.b32.xlu0 %v265, 7
        %v414 = vpop.permute.xlu0 %413
        %415 = vrot.lane.b32.xlu0 %v242, 7
        %v416 = vpop.permute.xlu0 %415
        %417 = vrot.lane.b32.xlu0 %v266, 7
        %v418 = vpop.permute.xlu0 %417
        %vm419 = vcmp.lt.s32.totalorder %v288, 7
        %v420 = vsel %vm419, %v416, %v418
        %v421 = vsel %vm419, %v414, %v416
        %v422 = vsel %vm419, %v412, %v414
        %v423 = vsel %vm419, %v410, %v412
        %v424 = vsel %vm419, %v408, %v410
        %v425 = vsel %vm419, %v406, %v408
        %v426 = vsel %vm419, %v404, %v406
        %v427 = vsel %vm419, %v418, %v404
        %v428 = vlaneseq
        %v429 = vshrl.u32 %v428, 7
        %v430 = vsub.s32 2, %v429
        %v431 = vrot.slane %v243, %v430
        %v432 = vlaneseq
        %v433 = vshrl.u32 %v432, 7
        %v434 = vsub.s32 2, %v433
        %v435 = vrot.slane %v244, %v434
        %v436 = vlaneseq
        %v437 = vshrl.u32 %v436, 7
        %v438 = vsub.s32 2, %v437
        %v439 = vrot.slane %v245, %v438
        %v440 = vlaneseq
        %v441 = vshrl.u32 %v440, 7
        %v442 = vsub.s32 2, %v441
        %v443 = vrot.slane %v246, %v442
        %v444 = vlaneseq
        %v445 = vshrl.u32 %v444, 7
        %v446 = vsub.s32 2, %v445
        %v447 = vrot.slane %v247, %v446
        %v448 = vlaneseq
        %v449 = vshrl.u32 %v448, 7
        %v450 = vsub.s32 2, %v449
        %v451 = vrot.slane %v248, %v450
        %v452 = vlaneseq
        %v453 = vshrl.u32 %v452, 7
        %v454 = vsub.s32 2, %v453
        %v455 = vrot.slane %v249, %v454
        %v456 = vlaneseq
        %v457 = vshrl.u32 %v456, 7
        %v458 = vsub.s32 2, %v457
        %v459 = vrot.slane %v250, %v458
        %v460 = vmul.f32 %v427, %v431
        %v461 = vmul.f32 %v426, %v435
        %v462 = vmul.f32 %v425, %v439
        %v463 = vmul.f32 %v424, %v443
        %v464 = vmul.f32 %v423, %v447
        %v465 = vmul.f32 %v422, %v451
        %v466 = vmul.f32 %v421, %v455
        %v467 = vmul.f32 %v420, %v459
        %468 = vrot.lane.b32.xlu0 %v239, 1
        %v469 = vpop.permute.xlu0 %468
        %470 = vrot.lane.b32.xlu0 %v263, 1
        %v471 = vpop.permute.xlu0 %470
        %472 = vrot.lane.b32.xlu0 %v240, 1
        %v473 = vpop.permute.xlu0 %472
        %474 = vrot.lane.b32.xlu0 %v264, 1
        %v475 = vpop.permute.xlu0 %474
        %476 = vrot.lane.b32.xlu0 %v241, 1
        %v477 = vpop.permute.xlu0 %476
        %478 = vrot.lane.b32.xlu0 %v265, 1
        %v479 = vpop.permute.xlu0 %478
        %480 = vrot.lane.b32.xlu0 %v242, 1
        %v481 = vpop.permute.xlu0 %480
        %482 = vrot.lane.b32.xlu0 %v266, 1
        %v483 = vpop.permute.xlu0 %482
        %vm484 = vcmp.lt.s32.totalorder %v288, 1
        %v485 = vsel %vm484, %v481, %v483
        %v486 = vsel %vm484, %v479, %v481
        %v487 = vsel %vm484, %v477, %v479
        %v488 = vsel %vm484, %v475, %v477
        %v489 = vsel %vm484, %v473, %v475
        %v490 = vsel %vm484, %v471, %v473
        %v491 = vsel %vm484, %v469, %v471
        %v492 = vsel %vm484, %v483, %v469
        %v493 = vlaneseq
        %v494 = vshrl.u32 %v493, 7
        %v495 = vsub.s32 3, %v494
        %v496 = vrot.slane %v243, %v495
        %v497 = vlaneseq
        %v498 = vshrl.u32 %v497, 7
        %v499 = vsub.s32 3, %v498
        %v500 = vrot.slane %v244, %v499
        %v501 = vlaneseq
        %v502 = vshrl.u32 %v501, 7
        %v503 = vsub.s32 3, %v502
        %v504 = vrot.slane %v245, %v503
        %v505 = vlaneseq
        %v506 = vshrl.u32 %v505, 7
        %v507 = vsub.s32 3, %v506
        %v508 = vrot.slane %v246, %v507
        %v509 = vlaneseq
        %v510 = vshrl.u32 %v509, 7
        %v511 = vsub.s32 3, %v510
        %v512 = vrot.slane %v247, %v511
        %v513 = vlaneseq
        %v514 = vshrl.u32 %v513, 7
        %v515 = vsub.s32 3, %v514
        %v516 = vrot.slane %v248, %v515
        %v517 = vlaneseq
        %v518 = vshrl.u32 %v517, 7
        %v519 = vsub.s32 3, %v518
        %v520 = vrot.slane %v249, %v519
        %v521 = vlaneseq
        %v522 = vshrl.u32 %v521, 7
        %v523 = vsub.s32 3, %v522
        %v524 = vrot.slane %v250, %v523
        %v525 = vmul.f32 %v492, %v496
        %v526 = vmul.f32 %v491, %v500
        %v527 = vmul.f32 %v490, %v504
        %v528 = vmul.f32 %v489, %v508
        %v529 = vmul.f32 %v488, %v512
        %v530 = vmul.f32 %v487, %v516
        %v531 = vmul.f32 %v486, %v520
        %v532 = vmul.f32 %v485, %v524
        %533 = vrot.lane.b32.xlu0 %v239, 127
        %v534 = vpop.permute.xlu0 %533
        %535 = vrot.lane.b32.xlu0 %v263, 127
        %v536 = vpop.permute.xlu0 %535
        %537 = vrot.lane.b32.xlu0 %v240, 127
        %v538 = vpop.permute.xlu0 %537
        %539 = vrot.lane.b32.xlu0 %v264, 127
        %v540 = vpop.permute.xlu0 %539
        %541 = vrot.lane.b32.xlu0 %v241, 127
        %v542 = vpop.permute.xlu0 %541
        %543 = vrot.lane.b32.xlu0 %v265, 127
        %v544 = vpop.permute.xlu0 %543
        %545 = vrot.lane.b32.xlu0 %v242, 127
        %v546 = vpop.permute.xlu0 %545
        %547 = vrot.lane.b32.xlu0 %v266, 127
        %v548 = vpop.permute.xlu0 %547
        %vm549 = vcmp.lt.s32.totalorder %v288, 127
        %v550 = vsel %vm549, %v546, %v548
        %v551 = vsel %vm549, %v544, %v546
        %v552 = vsel %vm549, %v542, %v544
        %v553 = vsel %vm549, %v540, %v542
        %v554 = vsel %vm549, %v538, %v540
        %v555 = vsel %vm549, %v536, %v538
        %v556 = vsel %vm549, %v534, %v536
        %v557 = vsel %vm549, %v548, %v534
        %v558 = vlaneseq
        %v559 = vshrl.u32 %v558, 7
        %v560 = vsub.s32 5, %v559
        %v561 = vrot.slane %v243, %v560
        %v562 = vlaneseq
        %v563 = vshrl.u32 %v562, 7
        %v564 = vsub.s32 5, %v563
        %v565 = vrot.slane %v244, %v564
        %v566 = vlaneseq
        %v567 = vshrl.u32 %v566, 7
        %v568 = vsub.s32 5, %v567
        %v569 = vrot.slane %v245, %v568
        %v570 = vlaneseq
        %v571 = vshrl.u32 %v570, 7
        %v572 = vsub.s32 5, %v571
        %v573 = vrot.slane %v246, %v572
        %v574 = vlaneseq
        %v575 = vshrl.u32 %v574, 7
        %v576 = vsub.s32 5, %v575
        %v577 = vrot.slane %v247, %v576
        %v578 = vlaneseq
        %v579 = vshrl.u32 %v578, 7
        %v580 = vsub.s32 5, %v579
        %v581 = vrot.slane %v248, %v580
        %v582 = vlaneseq
        %v583 = vshrl.u32 %v582, 7
        %v584 = vsub.s32 5, %v583
        %v585 = vrot.slane %v249, %v584
        %v586 = vlaneseq
        %v587 = vshrl.u32 %v586, 7
        %v588 = vsub.s32 5, %v587
        %v589 = vrot.slane %v250, %v588
        %v590 = vmul.f32 %v556, %v561
        %v591 = vmul.f32 %v555, %v565
        %v592 = vmul.f32 %v554, %v569
        %v593 = vmul.f32 %v553, %v573
        %v594 = vmul.f32 %v552, %v577
        %v595 = vmul.f32 %v551, %v581
        %v596 = vmul.f32 %v550, %v585
        %v597 = vmul.f32 %v557, %v589
        %598 = vrot.lane.b32.xlu0 %v239, 121
        %v599 = vpop.permute.xlu0 %598
        %600 = vrot.lane.b32.xlu0 %v263, 121
        %v601 = vpop.permute.xlu0 %600
        %602 = vrot.lane.b32.xlu0 %v240, 121
        %v603 = vpop.permute.xlu0 %602
        %604 = vrot.lane.b32.xlu0 %v264, 121
        %v605 = vpop.permute.xlu0 %604
        %606 = vrot.lane.b32.xlu0 %v241, 121
        %v607 = vpop.permute.xlu0 %606
        %608 = vrot.lane.b32.xlu0 %v265, 121
        %v609 = vpop.permute.xlu0 %608
        %610 = vrot.lane.b32.xlu0 %v242, 121
        %v611 = vpop.permute.xlu0 %610
        %612 = vrot.lane.b32.xlu0 %v266, 121
        %v613 = vpop.permute.xlu0 %612
        %vm614 = vcmp.lt.s32.totalorder %v288, 121
        %v615 = vsel %vm614, %v611, %v613
        %v616 = vsel %vm614, %v609, %v611
        %v617 = vsel %vm614, %v607, %v609
        %v618 = vsel %vm614, %v605, %v607
        %v619 = vsel %vm614, %v603, %v605
        %v620 = vsel %vm614, %v601, %v603
        %v621 = vsel %vm614, %v599, %v601
        %v622 = vsel %vm614, %v613, %v599
        %v623 = vlaneseq
        %v624 = vshrl.u32 %v623, 7
        %v625 = vsub.s32 6, %v624
        %v626 = vrot.slane %v243, %v625
        %v627 = vlaneseq
        %v628 = vshrl.u32 %v627, 7
        %v629 = vsub.s32 6, %v628
        %v630 = vrot.slane %v244, %v629
        %v631 = vlaneseq
        %v632 = vshrl.u32 %v631, 7
        %v633 = vsub.s32 6, %v632
        %v634 = vrot.slane %v245, %v633
        %v635 = vlaneseq
        %v636 = vshrl.u32 %v635, 7
        %v637 = vsub.s32 6, %v636
        %v638 = vrot.slane %v246, %v637
        %v639 = vlaneseq
        %v640 = vshrl.u32 %v639, 7
        %v641 = vsub.s32 6, %v640
        %v642 = vrot.slane %v247, %v641
        %v643 = vlaneseq
        %v644 = vshrl.u32 %v643, 7
        %v645 = vsub.s32 6, %v644
        %v646 = vrot.slane %v248, %v645
        %v647 = vlaneseq
        %v648 = vshrl.u32 %v647, 7
        %v649 = vsub.s32 6, %v648
        %v650 = vrot.slane %v249, %v649
        %v651 = vlaneseq
        %v652 = vshrl.u32 %v651, 7
        %v653 = vsub.s32 6, %v652
        %v654 = vrot.slane %v250, %v653
        %v655 = vmul.f32 %v621, %v626
        %v656 = vmul.f32 %v620, %v630
        %v657 = vmul.f32 %v619, %v634
        %v658 = vmul.f32 %v618, %v638
        %v659 = vmul.f32 %v617, %v642
        %v660 = vmul.f32 %v616, %v646
        %v661 = vmul.f32 %v615, %v650
        %v662 = vmul.f32 %v622, %v654
        %663 = vrot.lane.b32.xlu0 %v239, 120
        %v664 = vpop.permute.xlu0 %663
        %665 = vrot.lane.b32.xlu0 %v263, 120
        %v666 = vpop.permute.xlu0 %665
        %667 = vrot.lane.b32.xlu0 %v240, 120
        %v668 = vpop.permute.xlu0 %667
        %669 = vrot.lane.b32.xlu0 %v264, 120
        %v670 = vpop.permute.xlu0 %669
        %671 = vrot.lane.b32.xlu0 %v241, 120
        %v672 = vpop.permute.xlu0 %671
        %673 = vrot.lane.b32.xlu0 %v265, 120
        %v674 = vpop.permute.xlu0 %673
        %675 = vrot.lane.b32.xlu0 %v242, 120
        %v676 = vpop.permute.xlu0 %675
        %677 = vrot.lane.b32.xlu0 %v266, 120
        %v678 = vpop.permute.xlu0 %677
        %vm679 = vcmp.lt.s32.totalorder %v288, 120
        %v680 = vsel %vm679, %v676, %v678
        %v681 = vsel %vm679, %v674, %v676
        %v682 = vsel %vm679, %v672, %v674
        %v683 = vsel %vm679, %v670, %v672
        %v684 = vsel %vm679, %v668, %v670
        %v685 = vsel %vm679, %v666, %v668
        %v686 = vsel %vm679, %v664, %v666
        %v687 = vsel %vm679, %v678, %v664
        %v688 = vlaneseq
        %v689 = vshrl.u32 %v688, 7
        %v690 = vsub.s32 7, %v689
        %v691 = vrot.slane %v243, %v690
        %v692 = vlaneseq
        %v693 = vshrl.u32 %v692, 7
        %v694 = vsub.s32 7, %v693
        %v695 = vrot.slane %v244, %v694
        %v696 = vlaneseq
        %v697 = vshrl.u32 %v696, 7
        %v698 = vsub.s32 7, %v697
        %v699 = vrot.slane %v245, %v698
        %v700 = vlaneseq
        %v701 = vshrl.u32 %v700, 7
        %v702 = vsub.s32 7, %v701
        %v703 = vrot.slane %v246, %v702
        %v704 = vlaneseq
        %v705 = vshrl.u32 %v704, 7
        %v706 = vsub.s32 7, %v705
        %v707 = vrot.slane %v247, %v706
        %v708 = vlaneseq
        %v709 = vshrl.u32 %v708, 7
        %v710 = vsub.s32 7, %v709
        %v711 = vrot.slane %v248, %v710
        %v712 = vlaneseq
        %v713 = vshrl.u32 %v712, 7
        %v714 = vsub.s32 7, %v713
        %v715 = vrot.slane %v249, %v714
        %v716 = vlaneseq
        %v717 = vshrl.u32 %v716, 7
        %v718 = vsub.s32 7, %v717
        %v719 = vrot.slane %v250, %v718
        %v720 = vmul.f32 %v686, %v691
        %v721 = vmul.f32 %v685, %v695
        %v722 = vmul.f32 %v684, %v699
        %v723 = vmul.f32 %v683, %v703
        %v724 = vmul.f32 %v682, %v707
        %v725 = vmul.f32 %v681, %v711
        %v726 = vmul.f32 %v680, %v715
        %v727 = vmul.f32 %v687, %v719
        %728 = vrot.lane.b32.xlu0 %v239, 119
        %v729 = vpop.permute.xlu0 %728
        %730 = vrot.lane.b32.xlu0 %v263, 119
        %v731 = vpop.permute.xlu0 %730
        %732 = vrot.lane.b32.xlu0 %v240, 119
        %v733 = vpop.permute.xlu0 %732
        %734 = vrot.lane.b32.xlu0 %v264, 119
        %v735 = vpop.permute.xlu0 %734
        %736 = vrot.lane.b32.xlu0 %v241, 119
        %v737 = vpop.permute.xlu0 %736
        %738 = vrot.lane.b32.xlu0 %v265, 119
        %v739 = vpop.permute.xlu0 %738
        %740 = vrot.lane.b32.xlu0 %v242, 119
        %v741 = vpop.permute.xlu0 %740
        %742 = vrot.lane.b32.xlu0 %v266, 119
        %v743 = vpop.permute.xlu0 %742
        %vm744 = vcmp.lt.s32.totalorder %v288, 119
        %v745 = vsel %vm744, %v741, %v743
        %v746 = vsel %vm744, %v739, %v741
        %v747 = vsel %vm744, %v737, %v739
        %v748 = vsel %vm744, %v735, %v737
        %v749 = vsel %vm744, %v733, %v735
        %v750 = vsel %vm744, %v731, %v733
        %v751 = vsel %vm744, %v729, %v731
        %v752 = vsel %vm744, %v743, %v729
        %v753 = vlaneseq
        %v754 = vshrl.u32 %v753, 7
        %v755 = vsub.s32 0, %v754
        %v756 = vrot.slane %v251, %v755
        %v757 = vlaneseq
        %v758 = vshrl.u32 %v757, 7
        %v759 = vsub.s32 0, %v758
        %v760 = vrot.slane %v252, %v759
        %v761 = vlaneseq
        %v762 = vshrl.u32 %v761, 7
        %v763 = vsub.s32 0, %v762
        %v764 = vrot.slane %v253, %v763
        %v765 = vlaneseq
        %v766 = vshrl.u32 %v765, 7
        %v767 = vsub.s32 0, %v766
        %v768 = vrot.slane %v254, %v767
        %v769 = vlaneseq
        %v770 = vshrl.u32 %v769, 7
        %v771 = vsub.s32 0, %v770
        %v772 = vrot.slane %v255, %v771
        %v773 = vlaneseq
        %v774 = vshrl.u32 %v773, 7
        %v775 = vsub.s32 0, %v774
        %v776 = vrot.slane %v256, %v775
        %v777 = vlaneseq
        %v778 = vshrl.u32 %v777, 7
        %v779 = vsub.s32 0, %v778
        %v780 = vrot.slane %v257, %v779
        %v781 = vlaneseq
        %v782 = vshrl.u32 %v781, 7
        %v783 = vsub.s32 0, %v782
        %v784 = vrot.slane %v258, %v783
        %v785 = vmul.f32 %v751, %v756
        %v786 = vmul.f32 %v750, %v760
        %v787 = vmul.f32 %v749, %v764
        %v788 = vmul.f32 %v748, %v768
        %v789 = vmul.f32 %v747, %v772
        %v790 = vmul.f32 %v746, %v776
        %v791 = vmul.f32 %v745, %v780
        %v792 = vmul.f32 %v752, %v784
        %v801 = vrot.slane %v395, 5
        %v802 = vrot.slane %v396, 5
        %v803 = vrot.slane %v397, 5
        %v804 = vrot.slane %v398, 5
        %v805 = vrot.slane %v399, 5
        %v806 = vrot.slane %v400, 5
        %v807 = vrot.slane %v401, 5
        %v808 = vrot.slane %v402, 5
        %v825 = vrot.slane %v460, 2
        %v826 = vrot.slane %v461, 2
        %v827 = vrot.slane %v462, 2
        %v828 = vrot.slane %v463, 2
        %v829 = vrot.slane %v464, 2
        %v830 = vrot.slane %v465, 2
        %v831 = vrot.slane %v466, 2
        %v832 = vrot.slane %v467, 2
        %v849 = vrot.slane %v525, 7
        %v850 = vrot.slane %v526, 7
        %v851 = vrot.slane %v527, 7
        %v852 = vrot.slane %v528, 7
        %v853 = vrot.slane %v529, 7
        %v854 = vrot.slane %v530, 7
        %v855 = vrot.slane %v531, 7
        %v856 = vrot.slane %v532, 7
        %v865 = vcombine.low %v239, %v239
        %v866 = vcombine.low %v240, %v240
        %v867 = vcombine.low %v241, %v241
        %v868 = vcombine.low %v242, %v242
        %v881 = vrot.slane %v590, 1
        %v882 = vrot.slane %v591, 1
        %v883 = vrot.slane %v592, 1
        %v884 = vrot.slane %v593, 1
        %v885 = vrot.slane %v594, 1
        %v886 = vrot.slane %v595, 1
        %v887 = vrot.slane %v596, 1
        %v888 = vrot.slane %v597, 1
        %v905 = vrot.slane %v655, 6
        %v906 = vrot.slane %v656, 6
        %v907 = vrot.slane %v657, 6
        %v908 = vrot.slane %v658, 6
        %v909 = vrot.slane %v659, 6
        %v910 = vrot.slane %v660, 6
        %v911 = vrot.slane %v661, 6
        %v912 = vrot.slane %v662, 6
        %v929 = vrot.slane %v720, 3
        %v930 = vrot.slane %v721, 3
        %v931 = vrot.slane %v722, 3
        %v932 = vrot.slane %v723, 3
        %v933 = vrot.slane %v724, 3
        %v934 = vrot.slane %v725, 3
        %v935 = vrot.slane %v726, 3
        %v936 = vrot.slane %v727, 3
        %vm945 = vcmask 1042432
        %v946 = vsel %vm945, %v330, %v801
        %v947 = vsel %vm945, %v331, %v802
        %v948 = vsel %vm945, %v332, %v803
        %v949 = vsel %vm945, %v333, %v804
        %v950 = vsel %vm945, %v334, %v805
        %v951 = vsel %vm945, %v335, %v806
        %v952 = vsel %vm945, %v336, %v807
        %v953 = vsel %vm945, %v337, %v808
        %vm954 = vcmask 1045504
        %v955 = vsel %vm954, %v946, %v825
        %v956 = vsel %vm954, %v947, %v826
        %v957 = vsel %vm954, %v948, %v827
        %v958 = vsel %vm954, %v949, %v828
        %v959 = vsel %vm954, %v950, %v829
        %v960 = vsel %vm954, %v951, %v830
        %v961 = vsel %vm954, %v952, %v831
        %v962 = vsel %vm954, %v953, %v832
        %vm963 = vcmask 1040384
        %v964 = vsel %vm963, %v825, %v849
        %v965 = vsel %vm963, %v826, %v850
        %v966 = vsel %vm963, %v827, %v851
        %v967 = vsel %vm963, %v828, %v852
        %v968 = vsel %vm963, %v829, %v853
        %v969 = vsel %vm963, %v830, %v854
        %v970 = vsel %vm963, %v831, %v855
        %v971 = vsel %vm963, %v832, %v856
        %vm972 = vcmask 1043456
        %v973 = vsel %vm972, %v964, %v865
        %v974 = vsel %vm972, %v965, %v239
        %v975 = vsel %vm972, %v966, %v866
        %v976 = vsel %vm972, %v967, %v240
        %v977 = vsel %vm972, %v968, %v867
        %v978 = vsel %vm972, %v969, %v241
        %v979 = vsel %vm972, %v970, %v868
        %v980 = vsel %vm972, %v971, %v242
        %vm981 = vcmask 1046528
        %v982 = vsel %vm981, %v973, %v881
        %v983 = vsel %vm981, %v974, %v882
        %v984 = vsel %vm981, %v975, %v883
        %v985 = vsel %vm981, %v976, %v884
        %v986 = vsel %vm981, %v977, %v885
        %v987 = vsel %vm981, %v978, %v886
        %v988 = vsel %vm981, %v979, %v887
        %v989 = vsel %vm981, %v980, %v888
        %vm990 = vcmask 1041408
        %v991 = vsel %vm990, %v881, %v905
        %v992 = vsel %vm990, %v882, %v906
        %v993 = vsel %vm990, %v883, %v907
        %v994 = vsel %vm990, %v884, %v908
        %v995 = vsel %vm990, %v885, %v909
        %v996 = vsel %vm990, %v886, %v910
        %v997 = vsel %vm990, %v887, %v911
        %v998 = vsel %vm990, %v888, %v912
        %vm999 = vcmask 1044480
        %v1000 = vsel %vm999, %v991, %v929
        %v1001 = vsel %vm999, %v992, %v930
        %v1002 = vsel %vm999, %v993, %v931
        %v1003 = vsel %vm999, %v994, %v932
        %v1004 = vsel %vm999, %v995, %v933
        %v1005 = vsel %vm999, %v996, %v934
        %v1006 = vsel %vm999, %v997, %v935
        %v1007 = vsel %vm999, %v998, %v936
        %v1008 = vld [vmem:[#allocation2] sm:$0xf]
        %v1009 = vpack.c.bf16 %v982, %v955
        %v1010 = vpack.c.bf16 %v983, %v956
        %v1011 = vpack.c.bf16 %v984, %v957
        %v1012 = vpack.c.bf16 %v985, %v958
        %v1013 = vpack.c.bf16 %v986, %v959
        %v1014 = vpack.c.bf16 %v987, %v960
        %v1015 = vpack.c.bf16 %v988, %v961
        %v1016 = vpack.c.bf16 %v989, %v962
        %v1017 = vpack.c.bf16 %v785, %v1000
        %v1018 = vpack.c.bf16 %v786, %v1001
        %v1019 = vpack.c.bf16 %v787, %v1002
        %v1020 = vpack.c.bf16 %v788, %v1003
        %v1021 = vpack.c.bf16 %v789, %v1004
        %v1022 = vpack.c.bf16 %v790, %v1005
        %v1023 = vpack.c.bf16 %v791, %v1006
        %v1024 = vpack.c.bf16 %v792, %v1007
        %v1025 = vld [vmem:[%s4] sm:$0xff]
        %1027 = vset.pattern.permute.xlu0 0
        %1028 = vperm.xlu0 %1027, %v1025
        %v1029 = vpop.permute.xlu0 %1028
        %vm1031 = vcmask 220160
        %v1033 = vsel %vm1031, %v1008, 0
        %v1035 = vsel %vm999, 4294967295, 65535
        %v1036 = vsel %vm954, %v1035, 0
        %v1038 = vand.u32 %v1017, %v1036
        %v1041 = vand.u32 %v1018, %v1036
        %v1044 = vand.u32 %v1019, %v1036
        %v1047 = vand.u32 %v1020, %v1036
        %v1050 = vand.u32 %v1021, %v1036
        %v1053 = vand.u32 %v1022, %v1036
        %v1056 = vand.u32 %v1023, %v1036
        %v1059 = vand.u32 %v1024, %v1036
        %1061 = vmatprep.subr.bf16.mxu0 %v1010
        %1062 = vmatpush1.bf16.msra.mxu0 %v1009
        %1063 = vmatprep.subr.bf16.mxu0 %v1041
        %1064 = vmatpush1.bf16.msra.mxu0 %v1038
        %1065 = vmatprep.subr.bf16.mxu0 0
        %1066 = vmatpush1.bf16.msra.mxu0 0
        %1067 = vmatprep.subr.bf16.mxu0 0
        %1068 = vmatpush1.bf16.msra.mxu0 0
        %1069 = vmatprep.subr.bf16.mxu0 0
        %1070 = vmatpush1.bf16.msra.mxu0 0
        %1071 = vmatprep.subr.bf16.mxu0 0
        %1072 = vmatpush1.bf16.msra.mxu0 0
        %1073 = vmatprep.subr.bf16.mxu0 0
        %1074 = vmatpush1.bf16.msra.mxu0 0
        %1075 = vmatprep.subr.bf16.mxu0 0
        %1076 = vmatpush1.bf16.msra.mxu0 0
        %1077 = vmatprep.subr.bf16.mxu0 0
        %1078 = vmatpush1.bf16.msra.mxu0 0
        %1079 = vmatprep.subr.bf16.mxu0 0
        %1080 = vmatpush1.bf16.msra.mxu0 0
        %1081 = vmatprep.subr.bf16.mxu0 0
        %1082 = vmatpush1.bf16.msra.mxu0 0
        %1083 = vmatprep.subr.bf16.mxu0 0
        %1084 = vmatpush1.bf16.msra.mxu0 0
        %1085 = vmatprep.subr.bf16.mxu0 0
        %1086 = vmatpush1.bf16.msra.mxu0 0
        %1087 = vmatprep.subr.bf16.mxu0 0
        %1088 = vmatpush1.bf16.msra.mxu0 0
        %1089 = vmatprep.subr.bf16.mxu0 0
        %1090 = vmatpush1.bf16.msra.mxu0 0
        %1091 = vmatprep.subr.bf16.mxu0 0
        %1092 = vmatpush1.bf16.msra.mxu0 0
        %1093 = vmatprep.mubr.bf16.mxu0 0
        %1094 = vmatmul.mubr.bf16.gmra.mrb[0].mxu0 %v1033
        %v1095 = vpop.f32.mrb[0].mxu0
        %v1096 = vadd.f32 %v1029, %v1095
        %v1097 = vpop.f32.mrb[0].mxu0
        %v1098 = vadd.f32 %v1029, %v1097
        %v1099 = vpop.f32.mrb[0].mxu0
        %v1100 = vpop.f32.mrb[0].mxu0
        %1101 = vdwg.mxu0
        %1102 = vmatprep.subr.bf16.mxu0 %v1012
        %1103 = vmatpush1.bf16.msra.mxu0 %v1011
        %1104 = vmatprep.subr.bf16.mxu0 %v1047
        %1105 = vmatpush1.bf16.msra.mxu0 %v1044
        %1106 = vmatprep.subr.bf16.mxu0 0
        %1107 = vmatpush1.bf16.msra.mxu0 0
        %1108 = vmatprep.subr.bf16.mxu0 0
        %1109 = vmatpush1.bf16.msra.mxu0 0
        %1110 = vmatprep.subr.bf16.mxu0 0
        %1111 = vmatpush1.bf16.msra.mxu0 0
        %1112 = vmatprep.subr.bf16.mxu0 0
        %1113 = vmatpush1.bf16.msra.mxu0 0
        %1114 = vmatprep.subr.bf16.mxu0 0
        %1115 = vmatpush1.bf16.msra.mxu0 0
        %1116 = vmatprep.subr.bf16.mxu0 0
        %1117 = vmatpush1.bf16.msra.mxu0 0
        %1118 = vmatprep.subr.bf16.mxu0 0
        %1119 = vmatpush1.bf16.msra.mxu0 0
        %1120 = vmatprep.subr.bf16.mxu0 0
        %1121 = vmatpush1.bf16.msra.mxu0 0
        %1122 = vmatprep.subr.bf16.mxu0 0
        %1123 = vmatpush1.bf16.msra.mxu0 0
        %1124 = vmatprep.subr.bf16.mxu0 0
        %1125 = vmatpush1.bf16.msra.mxu0 0
        %1126 = vmatprep.subr.bf16.mxu0 0
        %1127 = vmatpush1.bf16.msra.mxu0 0
        %1128 = vmatprep.subr.bf16.mxu0 0
        %1129 = vmatpush1.bf16.msra.mxu0 0
        %1130 = vmatprep.subr.bf16.mxu0 0
        %1131 = vmatpush1.bf16.msra.mxu0 0
        %1132 = vmatprep.subr.bf16.mxu0 0
        %1133 = vmatpush1.bf16.msra.mxu0 0
        %1134 = vmatprep.mubr.bf16.mxu0 0
        %1135 = vmatmul.mubr.bf16.gmra.mrb[0].mxu0 %v1033
        %v1136 = vpop.f32.mrb[0].mxu0
        %v1137 = vadd.f32 %v1029, %v1136
        %v1138 = vpop.f32.mrb[0].mxu0
        %v1139 = vadd.f32 %v1029, %v1138
        %v1140 = vpop.f32.mrb[0].mxu0
        %v1141 = vpop.f32.mrb[0].mxu0
        %1142 = vdwg.mxu0
        %1143 = vmatprep.subr.bf16.mxu0 %v1014
        %1144 = vmatpush1.bf16.msra.mxu0 %v1013
        %1145 = vmatprep.subr.bf16.mxu0 %v1053
        %1146 = vmatpush1.bf16.msra.mxu0 %v1050
        %1147 = vmatprep.subr.bf16.mxu0 0
        %1148 = vmatpush1.bf16.msra.mxu0 0
        %1149 = vmatprep.subr.bf16.mxu0 0
        %1150 = vmatpush1.bf16.msra.mxu0 0
        %1151 = vmatprep.subr.bf16.mxu0 0
        %1152 = vmatpush1.bf16.msra.mxu0 0
        %1153 = vmatprep.subr.bf16.mxu0 0
        %1154 = vmatpush1.bf16.msra.mxu0 0
        %1155 = vmatprep.subr.bf16.mxu0 0
        %1156 = vmatpush1.bf16.msra.mxu0 0
        %1157 = vmatprep.subr.bf16.mxu0 0
        %1158 = vmatpush1.bf16.msra.mxu0 0
        %1159 = vmatprep.subr.bf16.mxu0 0
        %1160 = vmatpush1.bf16.msra.mxu0 0
        %1161 = vmatprep.subr.bf16.mxu0 0
        %1162 = vmatpush1.bf16.msra.mxu0 0
        %1163 = vmatprep.subr.bf16.mxu0 0
        %1164 = vmatpush1.bf16.msra.mxu0 0
        %1165 = vmatprep.subr.bf16.mxu0 0
        %1166 = vmatpush1.bf16.msra.mxu0 0
        %1167 = vmatprep.subr.bf16.mxu0 0
        %1168 = vmatpush1.bf16.msra.mxu0 0
        %1169 = vmatprep.subr.bf16.mxu0 0
        %1170 = vmatpush1.bf16.msra.mxu0 0
        %1171 = vmatprep.subr.bf16.mxu0 0
        %1172 = vmatpush1.bf16.msra.mxu0 0
        %1173 = vmatprep.subr.bf16.mxu0 0
        %1174 = vmatpush1.bf16.msra.mxu0 0
        %1175 = vmatprep.mubr.bf16.mxu0 0
        %1176 = vmatmul.mubr.bf16.gmra.mrb[0].mxu0 %v1033
        %v1177 = vpop.f32.mrb[0].mxu0
        %v1178 = vadd.f32 %v1029, %v1177
        %v1179 = vpop.f32.mrb[0].mxu0
        %v1180 = vadd.f32 %v1029, %v1179
        %v1181 = vpop.f32.mrb[0].mxu0
        %v1182 = vpop.f32.mrb[0].mxu0
        %1183 = vdwg.mxu0
        %1184 = vmatprep.subr.bf16.mxu0 %v1016
        %1185 = vmatpush1.bf16.msra.mxu0 %v1015
        %1186 = vmatprep.subr.bf16.mxu0 %v1059
        %1187 = vmatpush1.bf16.msra.mxu0 %v1056
        %1188 = vmatprep.subr.bf16.mxu0 0
        %1189 = vmatpush1.bf16.msra.mxu0 0
        %1190 = vmatprep.subr.bf16.mxu0 0
        %1191 = vmatpush1.bf16.msra.mxu0 0
        %1192 = vmatprep.subr.bf16.mxu0 0
        %1193 = vmatpush1.bf16.msra.mxu0 0
        %1194 = vmatprep.subr.bf16.mxu0 0
        %1195 = vmatpush1.bf16.msra.mxu0 0
        %1196 = vmatprep.subr.bf16.mxu0 0
        %1197 = vmatpush1.bf16.msra.mxu0 0
        %1198 = vmatprep.subr.bf16.mxu0 0
        %1199 = vmatpush1.bf16.msra.mxu0 0
        %1200 = vmatprep.subr.bf16.mxu0 0
        %1201 = vmatpush1.bf16.msra.mxu0 0
        %1202 = vmatprep.subr.bf16.mxu0 0
        %1203 = vmatpush1.bf16.msra.mxu0 0
        %1204 = vmatprep.subr.bf16.mxu0 0
        %1205 = vmatpush1.bf16.msra.mxu0 0
        %1206 = vmatprep.subr.bf16.mxu0 0
        %1207 = vmatpush1.bf16.msra.mxu0 0
        %1208 = vmatprep.subr.bf16.mxu0 0
        %1209 = vmatpush1.bf16.msra.mxu0 0
        %1210 = vmatprep.subr.bf16.mxu0 0
        %1211 = vmatpush1.bf16.msra.mxu0 0
        %1212 = vmatprep.subr.bf16.mxu0 0
        %1213 = vmatpush1.bf16.msra.mxu0 0
        %1214 = vmatprep.subr.bf16.mxu0 0
        %1215 = vmatpush1.bf16.msra.mxu0 0
        %1216 = vmatprep.mubr.bf16.mxu0 0
        %1217 = vmatmul.mubr.bf16.gmra.mrb[0].mxu0 %v1033
        %v1218 = vpop.f32.mrb[0].mxu0
        %v1219 = vadd.f32 %v1029, %v1218
        %v1220 = vpop.f32.mrb[0].mxu0
        %v1221 = vadd.f32 %v1029, %v1220
        %v1222 = vpop.f32.mrb[0].mxu0
        %v1223 = vpop.f32.mrb[0].mxu0
        %1224 = vdwg.mxu0
        %v1225 = vmax.f32 %v1096, 0.0
        %v1226 = vmax.f32 %v1098, 0.0
        %v1227 = vmax.f32 %v1137, 0.0
        %v1228 = vmax.f32 %v1139, 0.0
        %v1229 = vmax.f32 %v1178, 0.0
        %v1230 = vmax.f32 %v1180, 0.0
        %v1231 = vmax.f32 %v1219, 0.0
        %v1232 = vmax.f32 %v1221, 0.0
        %1233 = vrot.lane.b32.xlu0 %v1225, 9
        %v1234 = vpop.permute.xlu0 %1233
        %1235 = vrot.lane.b32.xlu0 %v1226, 9
        %v1236 = vpop.permute.xlu0 %1235
        %1237 = vrot.lane.b32.xlu0 %v1227, 9
        %v1238 = vpop.permute.xlu0 %1237
        %1239 = vrot.lane.b32.xlu0 %v1228, 9
        %v1240 = vpop.permute.xlu0 %1239
        %1241 = vrot.lane.b32.xlu0 %v1229, 9
        %v1242 = vpop.permute.xlu0 %1241
        %1243 = vrot.lane.b32.xlu0 %v1230, 9
        %v1244 = vpop.permute.xlu0 %1243
        %1245 = vrot.lane.b32.xlu0 %v1231, 9
        %v1246 = vpop.permute.xlu0 %1245
        %1247 = vrot.lane.b32.xlu0 %v1232, 9
        %v1248 = vpop.permute.xlu0 %1247
        %v1249 = vsel %vm289, %v1246, %v1248
        %v1250 = vsel %vm289, %v1244, %v1246
        %v1251 = vsel %vm289, %v1242, %v1244
        %v1252 = vsel %vm289, %v1240, %v1242
        %v1253 = vsel %vm289, %v1238, %v1240
        %v1254 = vsel %vm289, %v1236, %v1238
        %v1255 = vsel %vm289, %v1234, %v1236
        %v1256 = vsel %vm289, %v1248, %v1234
        %v1257 = vmul.f32 %v1256, %v301
        %v1258 = vmul.f32 %v1255, %v305
        %v1259 = vmul.f32 %v1254, %v309
        %v1260 = vmul.f32 %v1253, %v313
        %v1261 = vmul.f32 %v1252, %v317
        %v1262 = vmul.f32 %v1251, %v321
        %v1263 = vmul.f32 %v1250, %v325
        %v1264 = vmul.f32 %v1249, %v329
        %1265 = vrot.lane.b32.xlu0 %v1225, 8
        %v1266 = vpop.permute.xlu0 %1265
        %1267 = vrot.lane.b32.xlu0 %v1226, 8
        %v1268 = vpop.permute.xlu0 %1267
        %1269 = vrot.lane.b32.xlu0 %v1227, 8
        %v1270 = vpop.permute.xlu0 %1269
        %1271 = vrot.lane.b32.xlu0 %v1228, 8
        %v1272 = vpop.permute.xlu0 %1271
        %1273 = vrot.lane.b32.xlu0 %v1229, 8
        %v1274 = vpop.permute.xlu0 %1273
        %1275 = vrot.lane.b32.xlu0 %v1230, 8
        %v1276 = vpop.permute.xlu0 %1275
        %1277 = vrot.lane.b32.xlu0 %v1231, 8
        %v1278 = vpop.permute.xlu0 %1277
        %1279 = vrot.lane.b32.xlu0 %v1232, 8
        %v1280 = vpop.permute.xlu0 %1279
        %v1281 = vsel %vm354, %v1278, %v1280
        %v1282 = vsel %vm354, %v1276, %v1278
        %v1283 = vsel %vm354, %v1274, %v1276
        %v1284 = vsel %vm354, %v1272, %v1274
        %v1285 = vsel %vm354, %v1270, %v1272
        %v1286 = vsel %vm354, %v1268, %v1270
        %v1287 = vsel %vm354, %v1266, %v1268
        %v1288 = vsel %vm354, %v1280, %v1266
        %v1289 = vmul.f32 %v1288, %v366
        %v1290 = vmul.f32 %v1287, %v370
        %v1291 = vmul.f32 %v1286, %v374
        %v1292 = vmul.f32 %v1285, %v378
        %v1293 = vmul.f32 %v1284, %v382
        %v1294 = vmul.f32 %v1283, %v386
        %v1295 = vmul.f32 %v1282, %v390
        %v1296 = vmul.f32 %v1281, %v394
        %1297 = vrot.lane.b32.xlu0 %v1225, 7
        %v1298 = vpop.permute.xlu0 %1297
        %1299 = vrot.lane.b32.xlu0 %v1226, 7
        %v1300 = vpop.permute.xlu0 %1299
        %1301 = vrot.lane.b32.xlu0 %v1227, 7
        %v1302 = vpop.permute.xlu0 %1301
        %1303 = vrot.lane.b32.xlu0 %v1228, 7
        %v1304 = vpop.permute.xlu0 %1303
        %1305 = vrot.lane.b32.xlu0 %v1229, 7
        %v1306 = vpop.permute.xlu0 %1305
        %1307 = vrot.lane.b32.xlu0 %v1230, 7
        %v1308 = vpop.permute.xlu0 %1307
        %1309 = vrot.lane.b32.xlu0 %v1231, 7
        %v1310 = vpop.permute.xlu0 %1309
        %1311 = vrot.lane.b32.xlu0 %v1232, 7
        %v1312 = vpop.permute.xlu0 %1311
        %v1313 = vsel %vm419, %v1310, %v1312
        %v1314 = vsel %vm419, %v1308, %v1310
        %v1315 = vsel %vm419, %v1306, %v1308
        %v1316 = vsel %vm419, %v1304, %v1306
        %v1317 = vsel %vm419, %v1302, %v1304
        %v1318 = vsel %vm419, %v1300, %v1302
        %v1319 = vsel %vm419, %v1298, %v1300
        %v1320 = vsel %vm419, %v1312, %v1298
        %v1321 = vmul.f32 %v1320, %v431
        %v1322 = vmul.f32 %v1319, %v435
        %v1323 = vmul.f32 %v1318, %v439
        %v1324 = vmul.f32 %v1317, %v443
        %v1325 = vmul.f32 %v1316, %v447
        %v1326 = vmul.f32 %v1315, %v451
        %v1327 = vmul.f32 %v1314, %v455
        %v1328 = vmul.f32 %v1313, %v459
        %1329 = vrot.lane.b32.xlu0 %v1225, 1
        %v1330 = vpop.permute.xlu0 %1329
        %1331 = vrot.lane.b32.xlu0 %v1226, 1
        %v1332 = vpop.permute.xlu0 %1331
        %1333 = vrot.lane.b32.xlu0 %v1227, 1
        %v1334 = vpop.permute.xlu0 %1333
        %1335 = vrot.lane.b32.xlu0 %v1228, 1
        %v1336 = vpop.permute.xlu0 %1335
        %1337 = vrot.lane.b32.xlu0 %v1229, 1
        %v1338 = vpop.permute.xlu0 %1337
        %1339 = vrot.lane.b32.xlu0 %v1230, 1
        %v1340 = vpop.permute.xlu0 %1339
        %1341 = vrot.lane.b32.xlu0 %v1231, 1
        %v1342 = vpop.permute.xlu0 %1341
        %1343 = vrot.lane.b32.xlu0 %v1232, 1
        %v1344 = vpop.permute.xlu0 %1343
        %v1345 = vsel %vm484, %v1342, %v1344
        %v1346 = vsel %vm484, %v1340, %v1342
        %v1347 = vsel %vm484, %v1338, %v1340
        %v1348 = vsel %vm484, %v1336, %v1338
        %v1349 = vsel %vm484, %v1334, %v1336
        %v1350 = vsel %vm484, %v1332, %v1334
        %v1351 = vsel %vm484, %v1330, %v1332
        %v1352 = vsel %vm484, %v1344, %v1330
        %v1353 = vmul.f32 %v1352, %v496
        %v1354 = vmul.f32 %v1351, %v500
        %v1355 = vmul.f32 %v1350, %v504
        %v1356 = vmul.f32 %v1349, %v508
        %v1357 = vmul.f32 %v1348, %v512
        %v1358 = vmul.f32 %v1347, %v516
        %v1359 = vmul.f32 %v1346, %v520
        %v1360 = vmul.f32 %v1345, %v524
        %1361 = vrot.lane.b32.xlu0 %v1225, 127
        %v1362 = vpop.permute.xlu0 %1361
        %1363 = vrot.lane.b32.xlu0 %v1226, 127
        %v1364 = vpop.permute.xlu0 %1363
        %1365 = vrot.lane.b32.xlu0 %v1227, 127
        %v1366 = vpop.permute.xlu0 %1365
        %1367 = vrot.lane.b32.xlu0 %v1228, 127
        %v1368 = vpop.permute.xlu0 %1367
        %1369 = vrot.lane.b32.xlu0 %v1229, 127
        %v1370 = vpop.permute.xlu0 %1369
        %1371 = vrot.lane.b32.xlu0 %v1230, 127
        %v1372 = vpop.permute.xlu0 %1371
        %1373 = vrot.lane.b32.xlu0 %v1231, 127
        %v1374 = vpop.permute.xlu0 %1373
        %1375 = vrot.lane.b32.xlu0 %v1232, 127
        %v1376 = vpop.permute.xlu0 %1375
        %v1377 = vsel %vm549, %v1374, %v1376
        %v1378 = vsel %vm549, %v1372, %v1374
        %v1379 = vsel %vm549, %v1370, %v1372
        %v1380 = vsel %vm549, %v1368, %v1370
        %v1381 = vsel %vm549, %v1366, %v1368
        %v1382 = vsel %vm549, %v1364, %v1366
        %v1383 = vsel %vm549, %v1362, %v1364
        %v1384 = vsel %vm549, %v1376, %v1362
        %v1385 = vmul.f32 %v1383, %v561
        %v1386 = vmul.f32 %v1382, %v565
        %v1387 = vmul.f32 %v1381, %v569
        %v1388 = vmul.f32 %v1380, %v573
        %v1389 = vmul.f32 %v1379, %v577
        %v1390 = vmul.f32 %v1378, %v581
        %v1391 = vmul.f32 %v1377, %v585
        %v1392 = vmul.f32 %v1384, %v589
        %1393 = vrot.lane.b32.xlu0 %v1225, 121
        %v1394 = vpop.permute.xlu0 %1393
        %1395 = vrot.lane.b32.xlu0 %v1226, 121
        %v1396 = vpop.permute.xlu0 %1395
        %1397 = vrot.lane.b32.xlu0 %v1227, 121
        %v1398 = vpop.permute.xlu0 %1397
        %1399 = vrot.lane.b32.xlu0 %v1228, 121
        %v1400 = vpop.permute.xlu0 %1399
        %1401 = vrot.lane.b32.xlu0 %v1229, 121
        %v1402 = vpop.permute.xlu0 %1401
        %1403 = vrot.lane.b32.xlu0 %v1230, 121
        %v1404 = vpop.permute.xlu0 %1403
        %1405 = vrot.lane.b32.xlu0 %v1231, 121
        %v1406 = vpop.permute.xlu0 %1405
        %1407 = vrot.lane.b32.xlu0 %v1232, 121
        %v1408 = vpop.permute.xlu0 %1407
        %v1409 = vsel %vm614, %v1406, %v1408
        %v1410 = vsel %vm614, %v1404, %v1406
        %v1411 = vsel %vm614, %v1402, %v1404
        %v1412 = vsel %vm614, %v1400, %v1402
        %v1413 = vsel %vm614, %v1398, %v1400
        %v1414 = vsel %vm614, %v1396, %v1398
        %v1415 = vsel %vm614, %v1394, %v1396
        %v1416 = vsel %vm614, %v1408, %v1394
        %v1417 = vmul.f32 %v1415, %v626
        %v1418 = vmul.f32 %v1414, %v630
        %v1419 = vmul.f32 %v1413, %v634
        %v1420 = vmul.f32 %v1412, %v638
        %v1421 = vmul.f32 %v1411, %v642
        %v1422 = vmul.f32 %v1410, %v646
        %v1423 = vmul.f32 %v1409, %v650
        %v1424 = vmul.f32 %v1416, %v654
        %1425 = vrot.lane.b32.xlu0 %v1225, 120
        %v1426 = vpop.permute.xlu0 %1425
        %1427 = vrot.lane.b32.xlu0 %v1226, 120
        %v1428 = vpop.permute.xlu0 %1427
        %1429 = vrot.lane.b32.xlu0 %v1227, 120
        %v1430 = vpop.permute.xlu0 %1429
        %1431 = vrot.lane.b32.xlu0 %v1228, 120
        %v1432 = vpop.permute.xlu0 %1431
        %1433 = vrot.lane.b32.xlu0 %v1229, 120
        %v1434 = vpop.permute.xlu0 %1433
        %1435 = vrot.lane.b32.xlu0 %v1230, 120
        %v1436 = vpop.permute.xlu0 %1435
        %1437 = vrot.lane.b32.xlu0 %v1231, 120
        %v1438 = vpop.permute.xlu0 %1437
        %1439 = vrot.lane.b32.xlu0 %v1232, 120
        %v1440 = vpop.permute.xlu0 %1439
        %v1441 = vsel %vm679, %v1438, %v1440
        %v1442 = vsel %vm679, %v1436, %v1438
        %v1443 = vsel %vm679, %v1434, %v1436
        %v1444 = vsel %vm679, %v1432, %v1434
        %v1445 = vsel %vm679, %v1430, %v1432
        %v1446 = vsel %vm679, %v1428, %v1430
        %v1447 = vsel %vm679, %v1426, %v1428
        %v1448 = vsel %vm679, %v1440, %v1426
        %v1449 = vmul.f32 %v1447, %v691
        %v1450 = vmul.f32 %v1446, %v695
        %v1451 = vmul.f32 %v1445, %v699
        %v1452 = vmul.f32 %v1444, %v703
        %v1453 = vmul.f32 %v1443, %v707
        %v1454 = vmul.f32 %v1442, %v711
        %v1455 = vmul.f32 %v1441, %v715
        %v1456 = vmul.f32 %v1448, %v719
        %1457 = vrot.lane.b32.xlu0 %v1225, 119
        %v1458 = vpop.permute.xlu0 %1457
        %1459 = vrot.lane.b32.xlu0 %v1226, 119
        %v1460 = vpop.permute.xlu0 %1459
        %1461 = vrot.lane.b32.xlu0 %v1227, 119
        %v1462 = vpop.permute.xlu0 %1461
        %1463 = vrot.lane.b32.xlu0 %v1228, 119
        %v1464 = vpop.permute.xlu0 %1463
        %1465 = vrot.lane.b32.xlu0 %v1229, 119
        %v1466 = vpop.permute.xlu0 %1465
        %1467 = vrot.lane.b32.xlu0 %v1230, 119
        %v1468 = vpop.permute.xlu0 %1467
        %1469 = vrot.lane.b32.xlu0 %v1231, 119
        %v1470 = vpop.permute.xlu0 %1469
        %1471 = vrot.lane.b32.xlu0 %v1232, 119
        %v1472 = vpop.permute.xlu0 %1471
        %v1473 = vsel %vm744, %v1470, %v1472
        %v1474 = vsel %vm744, %v1468, %v1470
        %v1475 = vsel %vm744, %v1466, %v1468
        %v1476 = vsel %vm744, %v1464, %v1466
        %v1477 = vsel %vm744, %v1462, %v1464
        %v1478 = vsel %vm744, %v1460, %v1462
        %v1479 = vsel %vm744, %v1458, %v1460
        %v1480 = vsel %vm744, %v1472, %v1458
        %v1481 = vmul.f32 %v1479, %v756
        %v1482 = vmul.f32 %v1478, %v760
        %v1483 = vmul.f32 %v1477, %v764
        %v1484 = vmul.f32 %v1476, %v768
        %v1485 = vmul.f32 %v1475, %v772
        %v1486 = vmul.f32 %v1474, %v776
        %v1487 = vmul.f32 %v1473, %v780
        %v1488 = vmul.f32 %v1480, %v784
        %v1489 = vld [vmem:[#allocation2 + $0x4] sm:$0xf]
        %v1490 = vpack.c.bf16 %v1289, %v1257
        %v1491 = vpack.c.bf16 %v1290, %v1258
        %v1492 = vpack.c.bf16 %v1291, %v1259
        %v1493 = vpack.c.bf16 %v1292, %v1260
        %v1494 = vpack.c.bf16 %v1293, %v1261
        %v1495 = vpack.c.bf16 %v1294, %v1262
        %v1496 = vpack.c.bf16 %v1295, %v1263
        %v1497 = vpack.c.bf16 %v1296, %v1264
        %v1498 = vpack.c.bf16 %v1353, %v1321
        %v1499 = vpack.c.bf16 %v1354, %v1322
        %v1500 = vpack.c.bf16 %v1355, %v1323
        %v1501 = vpack.c.bf16 %v1356, %v1324
        %v1502 = vpack.c.bf16 %v1357, %v1325
        %v1503 = vpack.c.bf16 %v1358, %v1326
        %v1504 = vpack.c.bf16 %v1359, %v1327
        %v1505 = vpack.c.bf16 %v1360, %v1328
        %v1506 = vpack.c.bf16 %v1385, %v1225
        %v1507 = vpack.c.bf16 %v1386, %v1226
        %v1508 = vpack.c.bf16 %v1387, %v1227
        %v1509 = vpack.c.bf16 %v1388, %v1228
        %v1510 = vpack.c.bf16 %v1389, %v1229
        %v1511 = vpack.c.bf16 %v1390, %v1230
        %v1512 = vpack.c.bf16 %v1391, %v1231
        %v1513 = vpack.c.bf16 %v1392, %v1232
        %v1514 = vpack.c.bf16 %v1449, %v1417
        %v1515 = vpack.c.bf16 %v1450, %v1418
        %v1516 = vpack.c.bf16 %v1451, %v1419
        %v1517 = vpack.c.bf16 %v1452, %v1420
        %v1518 = vpack.c.bf16 %v1453, %v1421
        %v1519 = vpack.c.bf16 %v1454, %v1422
        %v1520 = vpack.c.bf16 %v1455, %v1423
        %v1521 = vpack.c.bf16 %v1456, %v1424
        %v1522 = vpack.c.bf16 %v955, %v1481
        %v1523 = vpack.c.bf16 %v956, %v1482
        %v1524 = vpack.c.bf16 %v957, %v1483
        %v1525 = vpack.c.bf16 %v958, %v1484
        %v1526 = vpack.c.bf16 %v959, %v1485
        %v1527 = vpack.c.bf16 %v960, %v1486
        %v1528 = vpack.c.bf16 %v961, %v1487
        %v1529 = vpack.c.bf16 %v962, %v1488
        %v1530 = vpack.c.bf16 %v1000, %v982
        %v1531 = vpack.c.bf16 %v1001, %v983
        %v1532 = vpack.c.bf16 %v1002, %v984
        %v1533 = vpack.c.bf16 %v1003, %v985
        %v1534 = vpack.c.bf16 %v1004, %v986
        %v1535 = vpack.c.bf16 %v1005, %v987
        %v1536 = vpack.c.bf16 %v1006, %v988
        %v1537 = vpack.c.bf16 %v1007, %v989
        %v1538 = vpack.c.bf16 %v785, %v785
        %v1539 = vpack.c.bf16 %v786, %v786
        %v1540 = vpack.c.bf16 %v787, %v787
        %v1541 = vpack.c.bf16 %v788, %v788
        %v1542 = vpack.c.bf16 %v789, %v789
        %v1543 = vpack.c.bf16 %v790, %v790
        %v1544 = vpack.c.bf16 %v791, %v791
        %v1545 = vpack.c.bf16 %v792, %v792
        %v1546 = vld [vmem:[%s4 + $0x8] sm:$0xff]
        %1548 = vset.pattern.permute.xlu0 0
        %1549 = vperm.xlu0 %1548, %v1546
        %v1550 = vpop.permute.xlu0 %1549
        %vm1552 = vcmask 809984
        %v1554 = vsel %vm1552, %v1489, 0
        %v1556 = vsel %vm963, 4294967295, 65535
        %v1557 = vsel %vm990, %v1556, 0
        %v1559 = vand.u32 %v1538, %v1557
        %v1562 = vand.u32 %v1539, %v1557
        %v1565 = vand.u32 %v1540, %v1557
        %v1568 = vand.u32 %v1541, %v1557
        %v1571 = vand.u32 %v1542, %v1557
        %v1574 = vand.u32 %v1543, %v1557
        %v1577 = vand.u32 %v1544, %v1557
        %v1580 = vand.u32 %v1545, %v1557
        %1582 = vmatprep.subr.bf16.mxu0 %v1491
        %1583 = vmatpush1.bf16.msra.mxu0 %v1490
        %1584 = vmatprep.subr.bf16.mxu0 %v1499
        %1585 = vmatpush1.bf16.msra.mxu0 %v1498
        %1586 = vmatprep.subr.bf16.mxu0 %v1507
        %1587 = vmatpush1.bf16.msra.mxu0 %v1506
        %1588 = vmatprep.subr.bf16.mxu0 %v1515
        %1589 = vmatpush1.bf16.msra.mxu0 %v1514
        %1590 = vmatprep.subr.bf16.mxu0 %v1523
        %1591 = vmatpush1.bf16.msra.mxu0 %v1522
        %1592 = vmatprep.subr.bf16.mxu0 %v1531
        %1593 = vmatpush1.bf16.msra.mxu0 %v1530
        %1594 = vmatprep.subr.bf16.mxu0 %v1562
        %1595 = vmatpush1.bf16.msra.mxu0 %v1559
        %1596 = vmatprep.subr.bf16.mxu0 0
        %1597 = vmatpush1.bf16.msra.mxu0 0
        %1598 = vmatprep.subr.bf16.mxu0 0
        %1599 = vmatpush1.bf16.msra.mxu0 0
        %1600 = vmatprep.subr.bf16.mxu0 0
        %1601 = vmatpush1.bf16.msra.mxu0 0
        %1602 = vmatprep.subr.bf16.mxu0 0
        %1603 = vmatpush1.bf16.msra.mxu0 0
        %1604 = vmatprep.subr.bf16.mxu0 0
        %1605 = vmatpush1.bf16.msra.mxu0 0
        %1606 = vmatprep.subr.bf16.mxu0 0
        %1607 = vmatpush1.bf16.msra.mxu0 0
        %1608 = vmatprep.subr.bf16.mxu0 0
        %1609 = vmatpush1.bf16.msra.mxu0 0
        %1610 = vmatprep.subr.bf16.mxu0 0
        %1611 = vmatpush1.bf16.msra.mxu0 0
        %1612 = vmatprep.subr.bf16.mxu0 0
        %1613 = vmatpush1.bf16.msra.mxu0 0
        %1614 = vmatprep.mubr.bf16.mxu0 0
        %1615 = vmatmul.mubr.bf16.gmra.mrb[0].mxu0 %v1554
        %v1616 = vpop.f32.mrb[0].mxu0
        %v1617 = vadd.f32 %v1550, %v1616
        %v1618 = vpop.f32.mrb[0].mxu0
        %v1619 = vadd.f32 %v1550, %v1618
        %v1620 = vpop.f32.mrb[0].mxu0
        %v1621 = vpop.f32.mrb[0].mxu0
        %1622 = vdwg.mxu0
        %1623 = vmatprep.subr.bf16.mxu0 %v1493
        %1624 = vmatpush1.bf16.msra.mxu0 %v1492
        %1625 = vmatprep.subr.bf16.mxu0 %v1501
        %1626 = vmatpush1.bf16.msra.mxu0 %v1500
        %1627 = vmatprep.subr.bf16.mxu0 %v1509
        %1628 = vmatpush1.bf16.msra.mxu0 %v1508
        %1629 = vmatprep.subr.bf16.mxu0 %v1517
        %1630 = vmatpush1.bf16.msra.mxu0 %v1516
        %1631 = vmatprep.subr.bf16.mxu0 %v1525
        %1632 = vmatpush1.bf16.msra.mxu0 %v1524
        %1633 = vmatprep.subr.bf16.mxu0 %v1533
        %1634 = vmatpush1.bf16.msra.mxu0 %v1532
        %1635 = vmatprep.subr.bf16.mxu0 %v1568
        %1636 = vmatpush1.bf16.msra.mxu0 %v1565
        %1637 = vmatprep.subr.bf16.mxu0 0
        %1638 = vmatpush1.bf16.msra.mxu0 0
        %1639 = vmatprep.subr.bf16.mxu0 0
        %1640 = vmatpush1.bf16.msra.mxu0 0
        %1641 = vmatprep.subr.bf16.mxu0 0
        %1642 = vmatpush1.bf16.msra.mxu0 0
        %1643 = vmatprep.subr.bf16.mxu0 0
        %1644 = vmatpush1.bf16.msra.mxu0 0
        %1645 = vmatprep.subr.bf16.mxu0 0
        %1646 = vmatpush1.bf16.msra.mxu0 0
        %1647 = vmatprep.subr.bf16.mxu0 0
        %1648 = vmatpush1.bf16.msra.mxu0 0
        %1649 = vmatprep.subr.bf16.mxu0 0
        %1650 = vmatpush1.bf16.msra.mxu0 0
        %1651 = vmatprep.subr.bf16.mxu0 0
        %1652 = vmatpush1.bf16.msra.mxu0 0
        %1653 = vmatprep.subr.bf16.mxu0 0
        %1654 = vmatpush1.bf16.msra.mxu0 0
        %1655 = vmatprep.mubr.bf16.mxu0 0
        %1656 = vmatmul.mubr.bf16.gmra.mrb[0].mxu0 %v1554
        %v1657 = vpop.f32.mrb[0].mxu0
        %v1658 = vadd.f32 %v1550, %v1657
        %v1659 = vpop.f32.mrb[0].mxu0
        %v1660 = vadd.f32 %v1550, %v1659
        %v1661 = vpop.f32.mrb[0].mxu0
        %v1662 = vpop.f32.mrb[0].mxu0
        %1663 = vdwg.mxu0
        %1664 = vmatprep.subr.bf16.mxu0 %v1495
        %1665 = vmatpush1.bf16.msra.mxu0 %v1494
        %1666 = vmatprep.subr.bf16.mxu0 %v1503
        %1667 = vmatpush1.bf16.msra.mxu0 %v1502
        %1668 = vmatprep.subr.bf16.mxu0 %v1511
        %1669 = vmatpush1.bf16.msra.mxu0 %v1510
        %1670 = vmatprep.subr.bf16.mxu0 %v1519
        %1671 = vmatpush1.bf16.msra.mxu0 %v1518
        %1672 = vmatprep.subr.bf16.mxu0 %v1527
        %1673 = vmatpush1.bf16.msra.mxu0 %v1526
        %1674 = vmatprep.subr.bf16.mxu0 %v1535
        %1675 = vmatpush1.bf16.msra.mxu0 %v1534
        %1676 = vmatprep.subr.bf16.mxu0 %v1574
        %1677 = vmatpush1.bf16.msra.mxu0 %v1571
        %1678 = vmatprep.subr.bf16.mxu0 0
        %1679 = vmatpush1.bf16.msra.mxu0 0
        %1680 = vmatprep.subr.bf16.mxu0 0
        %1681 = vmatpush1.bf16.msra.mxu0 0
        %1682 = vmatprep.subr.bf16.mxu0 0
        %1683 = vmatpush1.bf16.msra.mxu0 0
        %1684 = vmatprep.subr.bf16.mxu0 0
        %1685 = vmatpush1.bf16.msra.mxu0 0
        %1686 = vmatprep.subr.bf16.mxu0 0
        %1687 = vmatpush1.bf16.msra.mxu0 0
        %1688 = vmatprep.subr.bf16.mxu0 0
        %1689 = vmatpush1.bf16.msra.mxu0 0
        %1690 = vmatprep.subr.bf16.mxu0 0
        %1691 = vmatpush1.bf16.msra.mxu0 0
        %1692 = vmatprep.subr.bf16.mxu0 0
        %1693 = vmatpush1.bf16.msra.mxu0 0
        %1694 = vmatprep.subr.bf16.mxu0 0
        %1695 = vmatpush1.bf16.msra.mxu0 0
        %1696 = vmatprep.mubr.bf16.mxu0 0
        %1697 = vmatmul.mubr.bf16.gmra.mrb[0].mxu0 %v1554
        %v1698 = vpop.f32.mrb[0].mxu0
        %v1699 = vadd.f32 %v1550, %v1698
        %v1700 = vpop.f32.mrb[0].mxu0
        %v1701 = vadd.f32 %v1550, %v1700
        %v1702 = vpop.f32.mrb[0].mxu0
        %v1703 = vpop.f32.mrb[0].mxu0
        %1704 = vdwg.mxu0
        %1705 = vmatprep.subr.bf16.mxu0 %v1497
        %1706 = vmatpush1.bf16.msra.mxu0 %v1496
        %1707 = vmatprep.subr.bf16.mxu0 %v1505
        %1708 = vmatpush1.bf16.msra.mxu0 %v1504
        %1709 = vmatprep.subr.bf16.mxu0 %v1513
        %1710 = vmatpush1.bf16.msra.mxu0 %v1512
        %1711 = vmatprep.subr.bf16.mxu0 %v1521
        %1712 = vmatpush1.bf16.msra.mxu0 %v1520
        %1713 = vmatprep.subr.bf16.mxu0 %v1529
        %1714 = vmatpush1.bf16.msra.mxu0 %v1528
        %1715 = vmatprep.subr.bf16.mxu0 %v1537
        %1716 = vmatpush1.bf16.msra.mxu0 %v1536
        %1717 = vmatprep.subr.bf16.mxu0 %v1580
        %1718 = vmatpush1.bf16.msra.mxu0 %v1577
        %1719 = vmatprep.subr.bf16.mxu0 0
        %1720 = vmatpush1.bf16.msra.mxu0 0
        %1721 = vmatprep.subr.bf16.mxu0 0
        %1722 = vmatpush1.bf16.msra.mxu0 0
        %1723 = vmatprep.subr.bf16.mxu0 0
        %1724 = vmatpush1.bf16.msra.mxu0 0
        %1725 = vmatprep.subr.bf16.mxu0 0
        %1726 = vmatpush1.bf16.msra.mxu0 0
        %1727 = vmatprep.subr.bf16.mxu0 0
        %1728 = vmatpush1.bf16.msra.mxu0 0
        %1729 = vmatprep.subr.bf16.mxu0 0
        %1730 = vmatpush1.bf16.msra.mxu0 0
        %1731 = vmatprep.subr.bf16.mxu0 0
        %1732 = vmatpush1.bf16.msra.mxu0 0
        %1733 = vmatprep.subr.bf16.mxu0 0
        %1734 = vmatpush1.bf16.msra.mxu0 0
        %1735 = vmatprep.subr.bf16.mxu0 0
        %1736 = vmatpush1.bf16.msra.mxu0 0
        %1737 = vmatprep.mubr.bf16.mxu0 0
        %1738 = vmatmul.mubr.bf16.gmra.mrb[0].mxu0 %v1554
        %v1739 = vpop.f32.mrb[0].mxu0
        %v1740 = vadd.f32 %v1550, %v1739
        %v1741 = vpop.f32.mrb[0].mxu0
        %v1742 = vadd.f32 %v1550, %v1741
        %v1743 = vpop.f32.mrb[0].mxu0
        %v1744 = vpop.f32.mrb[0].mxu0
        %1745 = vdwg.mxu0
        %v1746 = vmax.f32 %v1617, 0.0
        %v1747 = vmax.f32 %v1619, 0.0
        %v1748 = vmax.f32 %v1658, 0.0
        %v1749 = vmax.f32 %v1660, 0.0
        %v1750 = vmax.f32 %v1699, 0.0
        %v1751 = vmax.f32 %v1701, 0.0
        %v1752 = vmax.f32 %v1740, 0.0
        %v1753 = vmax.f32 %v1742, 0.0
        %1754 = vrot.lane.b32.xlu0 %v1746, 9
        %v1755 = vpop.permute.xlu0 %1754
        %1756 = vrot.lane.b32.xlu0 %v1747, 9
        %v1757 = vpop.permute.xlu0 %1756
        %1758 = vrot.lane.b32.xlu0 %v1748, 9
        %v1759 = vpop.permute.xlu0 %1758
        %1760 = vrot.lane.b32.xlu0 %v1749, 9
        %v1761 = vpop.permute.xlu0 %1760
        %1762 = vrot.lane.b32.xlu0 %v1750, 9
        %v1763 = vpop.permute.xlu0 %1762
        %1764 = vrot.lane.b32.xlu0 %v1751, 9
        %v1765 = vpop.permute.xlu0 %1764
        %1766 = vrot.lane.b32.xlu0 %v1752, 9
        %v1767 = vpop.permute.xlu0 %1766
        %1768 = vrot.lane.b32.xlu0 %v1753, 9
        %v1769 = vpop.permute.xlu0 %1768
        %v1770 = vsel %vm289, %v1767, %v1769
        %v1771 = vsel %vm289, %v1765, %v1767
        %v1772 = vsel %vm289, %v1763, %v1765
        %v1773 = vsel %vm289, %v1761, %v1763
        %v1774 = vsel %vm289, %v1759, %v1761
        %v1775 = vsel %vm289, %v1757, %v1759
        %v1776 = vsel %vm289, %v1755, %v1757
        %v1777 = vsel %vm289, %v1769, %v1755
        %v1778 = vmul.f32 %v1777, %v301
        %v1779 = vmul.f32 %v1776, %v305
        %v1780 = vmul.f32 %v1775, %v309
        %v1781 = vmul.f32 %v1774, %v313
        %v1782 = vmul.f32 %v1773, %v317
        %v1783 = vmul.f32 %v1772, %v321
        %v1784 = vmul.f32 %v1771, %v325
        %v1785 = vmul.f32 %v1770, %v329
        %1786 = vrot.lane.b32.xlu0 %v1746, 8
        %v1787 = vpop.permute.xlu0 %1786
        %1788 = vrot.lane.b32.xlu0 %v1747, 8
        %v1789 = vpop.permute.xlu0 %1788
        %1790 = vrot.lane.b32.xlu0 %v1748, 8
        %v1791 = vpop.permute.xlu0 %1790
        %1792 = vrot.lane.b32.xlu0 %v1749, 8
        %v1793 = vpop.permute.xlu0 %1792
        %1794 = vrot.lane.b32.xlu0 %v1750, 8
        %v1795 = vpop.permute.xlu0 %1794
        %1796 = vrot.lane.b32.xlu0 %v1751, 8
        %v1797 = vpop.permute.xlu0 %1796
        %1798 = vrot.lane.b32.xlu0 %v1752, 8
        %v1799 = vpop.permute.xlu0 %1798
        %1800 = vrot.lane.b32.xlu0 %v1753, 8
        %v1801 = vpop.permute.xlu0 %1800
        %v1802 = vsel %vm354, %v1799, %v1801
        %v1803 = vsel %vm354, %v1797, %v1799
        %v1804 = vsel %vm354, %v1795, %v1797
        %v1805 = vsel %vm354, %v1793, %v1795
        %v1806 = vsel %vm354, %v1791, %v1793
        %v1807 = vsel %vm354, %v1789, %v1791
        %v1808 = vsel %vm354, %v1787, %v1789
        %v1809 = vsel %vm354, %v1801, %v1787
        %v1810 = vmul.f32 %v1809, %v366
        %v1811 = vmul.f32 %v1808, %v370
        %v1812 = vmul.f32 %v1807, %v374
        %v1813 = vmul.f32 %v1806, %v378
        %v1814 = vmul.f32 %v1805, %v382
        %v1815 = vmul.f32 %v1804, %v386
        %v1816 = vmul.f32 %v1803, %v390
        %v1817 = vmul.f32 %v1802, %v394
        %1818 = vrot.lane.b32.xlu0 %v1746, 7
        %v1819 = vpop.permute.xlu0 %1818
        %1820 = vrot.lane.b32.xlu0 %v1747, 7
        %v1821 = vpop.permute.xlu0 %1820
        %1822 = vrot.lane.b32.xlu0 %v1748, 7
        %v1823 = vpop.permute.xlu0 %1822
        %1824 = vrot.lane.b32.xlu0 %v1749, 7
        %v1825 = vpop.permute.xlu0 %1824
        %1826 = vrot.lane.b32.xlu0 %v1750, 7
        %v1827 = vpop.permute.xlu0 %1826
        %1828 = vrot.lane.b32.xlu0 %v1751, 7
        %v1829 = vpop.permute.xlu0 %1828
        %1830 = vrot.lane.b32.xlu0 %v1752, 7
        %v1831 = vpop.permute.xlu0 %1830
        %1832 = vrot.lane.b32.xlu0 %v1753, 7
        %v1833 = vpop.permute.xlu0 %1832
        %v1834 = vsel %vm419, %v1831, %v1833
        %v1835 = vsel %vm419, %v1829, %v1831
        %v1836 = vsel %vm419, %v1827, %v1829
        %v1837 = vsel %vm419, %v1825, %v1827
        %v1838 = vsel %vm419, %v1823, %v1825
        %v1839 = vsel %vm419, %v1821, %v1823
        %v1840 = vsel %vm419, %v1819, %v1821
        %v1841 = vsel %vm419, %v1833, %v1819
        %v1842 = vmul.f32 %v1841, %v431
        %v1843 = vmul.f32 %v1840, %v435
        %v1844 = vmul.f32 %v1839, %v439
        %v1845 = vmul.f32 %v1838, %v443
        %v1846 = vmul.f32 %v1837, %v447
        %v1847 = vmul.f32 %v1836, %v451
        %v1848 = vmul.f32 %v1835, %v455
        %v1849 = vmul.f32 %v1834, %v459
        %1850 = vrot.lane.b32.xlu0 %v1746, 1
        %v1851 = vpop.permute.xlu0 %1850
        %1852 = vrot.lane.b32.xlu0 %v1747, 1
        %v1853 = vpop.permute.xlu0 %1852
        %1854 = vrot.lane.b32.xlu0 %v1748, 1
        %v1855 = vpop.permute.xlu0 %1854
        %1856 = vrot.lane.b32.xlu0 %v1749, 1
        %v1857 = vpop.permute.xlu0 %1856
        %1858 = vrot.lane.b32.xlu0 %v1750, 1
        %v1859 = vpop.permute.xlu0 %1858
        %1860 = vrot.lane.b32.xlu0 %v1751, 1
        %v1861 = vpop.permute.xlu0 %1860
        %1862 = vrot.lane.b32.xlu0 %v1752, 1
        %v1863 = vpop.permute.xlu0 %1862
        %1864 = vrot.lane.b32.xlu0 %v1753, 1
        %v1865 = vpop.permute.xlu0 %1864
        %v1866 = vsel %vm484, %v1863, %v1865
        %v1867 = vsel %vm484, %v1861, %v1863
        %v1868 = vsel %vm484, %v1859, %v1861
        %v1869 = vsel %vm484, %v1857, %v1859
        %v1870 = vsel %vm484, %v1855, %v1857
        %v1871 = vsel %vm484, %v1853, %v1855
        %v1872 = vsel %vm484, %v1851, %v1853
        %v1873 = vsel %vm484, %v1865, %v1851
        %v1874 = vmul.f32 %v1873, %v496
        %v1875 = vmul.f32 %v1872, %v500
        %v1876 = vmul.f32 %v1871, %v504
        %v1877 = vmul.f32 %v1870, %v508
        %v1878 = vmul.f32 %v1869, %v512
        %v1879 = vmul.f32 %v1868, %v516
        %v1880 = vmul.f32 %v1867, %v520
        %v1881 = vmul.f32 %v1866, %v524
        %1882 = vrot.lane.b32.xlu0 %v1746, 127
        %v1883 = vpop.permute.xlu0 %1882
        %1884 = vrot.lane.b32.xlu0 %v1747, 127
        %v1885 = vpop.permute.xlu0 %1884
        %1886 = vrot.lane.b32.xlu0 %v1748, 127
        %v1887 = vpop.permute.xlu0 %1886
        %1888 = vrot.lane.b32.xlu0 %v1749, 127
        %v1889 = vpop.permute.xlu0 %1888
        %1890 = vrot.lane.b32.xlu0 %v1750, 127
        %v1891 = vpop.permute.xlu0 %1890
        %1892 = vrot.lane.b32.xlu0 %v1751, 127
        %v1893 = vpop.permute.xlu0 %1892
        %1894 = vrot.lane.b32.xlu0 %v1752, 127
        %v1895 = vpop.permute.xlu0 %1894
        %1896 = vrot.lane.b32.xlu0 %v1753, 127
        %v1897 = vpop.permute.xlu0 %1896
        %v1898 = vsel %vm549, %v1895, %v1897
        %v1899 = vsel %vm549, %v1893, %v1895
        %v1900 = vsel %vm549, %v1891, %v1893
        %v1901 = vsel %vm549, %v1889, %v1891
        %v1902 = vsel %vm549, %v1887, %v1889
        %v1903 = vsel %vm549, %v1885, %v1887
        %v1904 = vsel %vm549, %v1883, %v1885
        %v1905 = vsel %vm549, %v1897, %v1883
        %v1906 = vmul.f32 %v1904, %v561
        %v1907 = vmul.f32 %v1903, %v565
        %v1908 = vmul.f32 %v1902, %v569
        %v1909 = vmul.f32 %v1901, %v573
        %v1910 = vmul.f32 %v1900, %v577
        %v1911 = vmul.f32 %v1899, %v581
        %v1912 = vmul.f32 %v1898, %v585
        %v1913 = vmul.f32 %v1905, %v589
        %1914 = vrot.lane.b32.xlu0 %v1746, 121
        %v1915 = vpop.permute.xlu0 %1914
        %1916 = vrot.lane.b32.xlu0 %v1747, 121
        %v1917 = vpop.permute.xlu0 %1916
        %1918 = vrot.lane.b32.xlu0 %v1748, 121
        %v1919 = vpop.permute.xlu0 %1918
        %1920 = vrot.lane.b32.xlu0 %v1749, 121
        %v1921 = vpop.permute.xlu0 %1920
        %1922 = vrot.lane.b32.xlu0 %v1750, 121
        %v1923 = vpop.permute.xlu0 %1922
        %1924 = vrot.lane.b32.xlu0 %v1751, 121
        %v1925 = vpop.permute.xlu0 %1924
        %1926 = vrot.lane.b32.xlu0 %v1752, 121
        %v1927 = vpop.permute.xlu0 %1926
        %1928 = vrot.lane.b32.xlu0 %v1753, 121
        %v1929 = vpop.permute.xlu0 %1928
        %v1930 = vsel %vm614, %v1927, %v1929
        %v1931 = vsel %vm614, %v1925, %v1927
        %v1932 = vsel %vm614, %v1923, %v1925
        %v1933 = vsel %vm614, %v1921, %v1923
        %v1934 = vsel %vm614, %v1919, %v1921
        %v1935 = vsel %vm614, %v1917, %v1919
        %v1936 = vsel %vm614, %v1915, %v1917
        %v1937 = vsel %vm614, %v1929, %v1915
        %v1938 = vmul.f32 %v1936, %v626
        %v1939 = vmul.f32 %v1935, %v630
        %v1940 = vmul.f32 %v1934, %v634
        %v1941 = vmul.f32 %v1933, %v638
        %v1942 = vmul.f32 %v1932, %v642
        %v1943 = vmul.f32 %v1931, %v646
        %v1944 = vmul.f32 %v1930, %v650
        %v1945 = vmul.f32 %v1937, %v654
        %1946 = vrot.lane.b32.xlu0 %v1746, 120
        %v1947 = vpop.permute.xlu0 %1946
        %1948 = vrot.lane.b32.xlu0 %v1747, 120
        %v1949 = vpop.permute.xlu0 %1948
        %1950 = vrot.lane.b32.xlu0 %v1748, 120
        %v1951 = vpop.permute.xlu0 %1950
        %1952 = vrot.lane.b32.xlu0 %v1749, 120
        %v1953 = vpop.permute.xlu0 %1952
        %1954 = vrot.lane.b32.xlu0 %v1750, 120
        %v1955 = vpop.permute.xlu0 %1954
        %1956 = vrot.lane.b32.xlu0 %v1751, 120
        %v1957 = vpop.permute.xlu0 %1956
        %1958 = vrot.lane.b32.xlu0 %v1752, 120
        %v1959 = vpop.permute.xlu0 %1958
        %1960 = vrot.lane.b32.xlu0 %v1753, 120
        %v1961 = vpop.permute.xlu0 %1960
        %v1962 = vsel %vm679, %v1959, %v1961
        %v1963 = vsel %vm679, %v1957, %v1959
        %v1964 = vsel %vm679, %v1955, %v1957
        %v1965 = vsel %vm679, %v1953, %v1955
        %v1966 = vsel %vm679, %v1951, %v1953
        %v1967 = vsel %vm679, %v1949, %v1951
        %v1968 = vsel %vm679, %v1947, %v1949
        %v1969 = vsel %vm679, %v1961, %v1947
        %v1970 = vmul.f32 %v1968, %v691
        %v1971 = vmul.f32 %v1967, %v695
        %v1972 = vmul.f32 %v1966, %v699
        %v1973 = vmul.f32 %v1965, %v703
        %v1974 = vmul.f32 %v1964, %v707
        %v1975 = vmul.f32 %v1963, %v711
        %v1976 = vmul.f32 %v1962, %v715
        %v1977 = vmul.f32 %v1969, %v719
        %1978 = vrot.lane.b32.xlu0 %v1746, 119
        %v1979 = vpop.permute.xlu0 %1978
        %1980 = vrot.lane.b32.xlu0 %v1747, 119
        %v1981 = vpop.permute.xlu0 %1980
        %1982 = vrot.lane.b32.xlu0 %v1748, 119
        %v1983 = vpop.permute.xlu0 %1982
        %1984 = vrot.lane.b32.xlu0 %v1749, 119
        %v1985 = vpop.permute.xlu0 %1984
        %1986 = vrot.lane.b32.xlu0 %v1750, 119
        %v1987 = vpop.permute.xlu0 %1986
        %1988 = vrot.lane.b32.xlu0 %v1751, 119
        %v1989 = vpop.permute.xlu0 %1988
        %1990 = vrot.lane.b32.xlu0 %v1752, 119
        %v1991 = vpop.permute.xlu0 %1990
        %1992 = vrot.lane.b32.xlu0 %v1753, 119
        %v1993 = vpop.permute.xlu0 %1992
        %v1994 = vsel %vm744, %v1991, %v1993
        %v1995 = vsel %vm744, %v1989, %v1991
        %v1996 = vsel %vm744, %v1987, %v1989
        %v1997 = vsel %vm744, %v1985, %v1987
        %v1998 = vsel %vm744, %v1983, %v1985
        %v1999 = vsel %vm744, %v1981, %v1983
        %v2000 = vsel %vm744, %v1979, %v1981
        %v2001 = vsel %vm744, %v1993, %v1979
        %v2002 = vmul.f32 %v2000, %v756
        %v2003 = vmul.f32 %v1999, %v760
        %v2004 = vmul.f32 %v1998, %v764
        %v2005 = vmul.f32 %v1997, %v768
        %v2006 = vmul.f32 %v1996, %v772
        %v2007 = vmul.f32 %v1995, %v776
        %v2008 = vmul.f32 %v1994, %v780
        %v2009 = vmul.f32 %v2001, %v784
        %v2010 = vld [vmem:[#allocation2 + $0x8] sm:$0xf]
        %v2011 = vpack.c.bf16 %v1810, %v1778
        %v2012 = vpack.c.bf16 %v1811, %v1779
        %v2013 = vpack.c.bf16 %v1812, %v1780
        %v2014 = vpack.c.bf16 %v1813, %v1781
        %v2015 = vpack.c.bf16 %v1814, %v1782
        %v2016 = vpack.c.bf16 %v1815, %v1783
        %v2017 = vpack.c.bf16 %v1816, %v1784
        %v2018 = vpack.c.bf16 %v1817, %v1785
        %v2019 = vpack.c.bf16 %v1874, %v1842
        %v2020 = vpack.c.bf16 %v1875, %v1843
        %v2021 = vpack.c.bf16 %v1876, %v1844
        %v2022 = vpack.c.bf16 %v1877, %v1845
        %v2023 = vpack.c.bf16 %v1878, %v1846
        %v2024 = vpack.c.bf16 %v1879, %v1847
        %v2025 = vpack.c.bf16 %v1880, %v1848
        %v2026 = vpack.c.bf16 %v1881, %v1849
        %v2027 = vpack.c.bf16 %v1906, %v1746
        %v2028 = vpack.c.bf16 %v1907, %v1747
        %v2029 = vpack.c.bf16 %v1908, %v1748
        %v2030 = vpack.c.bf16 %v1909, %v1749
        %v2031 = vpack.c.bf16 %v1910, %v1750
        %v2032 = vpack.c.bf16 %v1911, %v1751
        %v2033 = vpack.c.bf16 %v1912, %v1752
        %v2034 = vpack.c.bf16 %v1913, %v1753
        %v2035 = vpack.c.bf16 %v1970, %v1938
        %v2036 = vpack.c.bf16 %v1971, %v1939
        %v2037 = vpack.c.bf16 %v1972, %v1940
        %v2038 = vpack.c.bf16 %v1973, %v1941
        %v2039 = vpack.c.bf16 %v1974, %v1942
        %v2040 = vpack.c.bf16 %v1975, %v1943
        %v2041 = vpack.c.bf16 %v1976, %v1944
        %v2042 = vpack.c.bf16 %v1977, %v1945
        %v2043 = vpack.c.bf16 %v955, %v2002
        %v2044 = vpack.c.bf16 %v956, %v2003
        %v2045 = vpack.c.bf16 %v957, %v2004
        %v2046 = vpack.c.bf16 %v958, %v2005
        %v2047 = vpack.c.bf16 %v959, %v2006
        %v2048 = vpack.c.bf16 %v960, %v2007
        %v2049 = vpack.c.bf16 %v961, %v2008
        %v2050 = vpack.c.bf16 %v962, %v2009
        %v2051 = vld [vmem:[%s4 + $0x10] sm:$0xff]
        %2053 = vset.pattern.permute.xlu0 0
        %2054 = vperm.xlu0 %2053, %v2051
        %v2055 = vpop.permute.xlu0 %2054
        %v2058 = vsel %vm1552, %v2010, 0
        %2060 = vmatprep.subr.bf16.mxu0 %v2012
        %2061 = vmatpush1.bf16.msra.mxu0 %v2011
        %2062 = vmatprep.subr.bf16.mxu0 %v2020
        %2063 = vmatpush1.bf16.msra.mxu0 %v2019
        %2064 = vmatprep.subr.bf16.mxu0 %v2028
        %2065 = vmatpush1.bf16.msra.mxu0 %v2027
        %2066 = vmatprep.subr.bf16.mxu0 %v2036
        %2067 = vmatpush1.bf16.msra.mxu0 %v2035
        %2068 = vmatprep.subr.bf16.mxu0 %v2044
        %2069 = vmatpush1.bf16.msra.mxu0 %v2043
        %2070 = vmatprep.subr.bf16.mxu0 %v1531
        %2071 = vmatpush1.bf16.msra.mxu0 %v1530
        %2072 = vmatprep.subr.bf16.mxu0 %v1562
        %2073 = vmatpush1.bf16.msra.mxu0 %v1559
        %2074 = vmatprep.subr.bf16.mxu0 0
        %2075 = vmatpush1.bf16.msra.mxu0 0
        %2076 = vmatprep.subr.bf16.mxu0 0
        %2077 = vmatpush1.bf16.msra.mxu0 0
        %2078 = vmatprep.subr.bf16.mxu0 0
        %2079 = vmatpush1.bf16.msra.mxu0 0
        %2080 = vmatprep.subr.bf16.mxu0 0
        %2081 = vmatpush1.bf16.msra.mxu0 0
        %2082 = vmatprep.subr.bf16.mxu0 0
        %2083 = vmatpush1.bf16.msra.mxu0 0
        %2084 = vmatprep.subr.bf16.mxu0 0
        %2085 = vmatpush1.bf16.msra.mxu0 0
        %2086 = vmatprep.subr.bf16.mxu0 0
        %2087 = vmatpush1.bf16.msra.mxu0 0
        %2088 = vmatprep.subr.bf16.mxu0 0
        %2089 = vmatpush1.bf16.msra.mxu0 0
        %2090 = vmatprep.subr.bf16.mxu0 0
        %2091 = vmatpush1.bf16.msra.mxu0 0
        %2092 = vmatprep.mubr.bf16.mxu0 0
        %2093 = vmatmul.mubr.bf16.gmra.mrb[0].mxu0 %v2058
        %v2094 = vpop.f32.mrb[0].mxu0
        %v2095 = vadd.f32 %v2055, %v2094
        %v2096 = vpop.f32.mrb[0].mxu0
        %v2097 = vadd.f32 %v2055, %v2096
        %v2098 = vpop.f32.mrb[0].mxu0
        %v2099 = vpop.f32.mrb[0].mxu0
        %2100 = vdwg.mxu0
        %2101 = vmatprep.subr.bf16.mxu0 %v2014
        %2102 = vmatpush1.bf16.msra.mxu0 %v2013
        %2103 = vmatprep.subr.bf16.mxu0 %v2022
        %2104 = vmatpush1.bf16.msra.mxu0 %v2021
        %2105 = vmatprep.subr.bf16.mxu0 %v2030
        %2106 = vmatpush1.bf16.msra.mxu0 %v2029
        %2107 = vmatprep.subr.bf16.mxu0 %v2038
        %2108 = vmatpush1.bf16.msra.mxu0 %v2037
        %2109 = vmatprep.subr.bf16.mxu0 %v2046
        %2110 = vmatpush1.bf16.msra.mxu0 %v2045
        %2111 = vmatprep.subr.bf16.mxu0 %v1533
        %2112 = vmatpush1.bf16.msra.mxu0 %v1532
        %2113 = vmatprep.subr.bf16.mxu0 %v1568
        %2114 = vmatpush1.bf16.msra.mxu0 %v1565
        %2115 = vmatprep.subr.bf16.mxu0 0
        %2116 = vmatpush1.bf16.msra.mxu0 0
        %2117 = vmatprep.subr.bf16.mxu0 0
        %2118 = vmatpush1.bf16.msra.mxu0 0
        %2119 = vmatprep.subr.bf16.mxu0 0
        %2120 = vmatpush1.bf16.msra.mxu0 0
        %2121 = vmatprep.subr.bf16.mxu0 0
        %2122 = vmatpush1.bf16.msra.mxu0 0
        %2123 = vmatprep.subr.bf16.mxu0 0
        %2124 = vmatpush1.bf16.msra.mxu0 0
        %2125 = vmatprep.subr.bf16.mxu0 0
        %2126 = vmatpush1.bf16.msra.mxu0 0
        %2127 = vmatprep.subr.bf16.mxu0 0
        %2128 = vmatpush1.bf16.msra.mxu0 0
        %2129 = vmatprep.subr.bf16.mxu0 0
        %2130 = vmatpush1.bf16.msra.mxu0 0
        %2131 = vmatprep.subr.bf16.mxu0 0
        %2132 = vmatpush1.bf16.msra.mxu0 0
        %2133 = vmatprep.mubr.bf16.mxu0 0
        %2134 = vmatmul.mubr.bf16.gmra.mrb[0].mxu0 %v2058
        %v2135 = vpop.f32.mrb[0].mxu0
        %v2136 = vadd.f32 %v2055, %v2135
        %v2137 = vpop.f32.mrb[0].mxu0
        %v2138 = vadd.f32 %v2055, %v2137
        %v2139 = vpop.f32.mrb[0].mxu0
        %v2140 = vpop.f32.mrb[0].mxu0
        %2141 = vdwg.mxu0
        %2142 = vmatprep.subr.bf16.mxu0 %v2016
        %2143 = vmatpush1.bf16.msra.mxu0 %v2015
        %2144 = vmatprep.subr.bf16.mxu0 %v2024
        %2145 = vmatpush1.bf16.msra.mxu0 %v2023
        %2146 = vmatprep.subr.bf16.mxu0 %v2032
        %2147 = vmatpush1.bf16.msra.mxu0 %v2031
        %2148 = vmatprep.subr.bf16.mxu0 %v2040
        %2149 = vmatpush1.bf16.msra.mxu0 %v2039
        %2150 = vmatprep.subr.bf16.mxu0 %v2048
        %2151 = vmatpush1.bf16.msra.mxu0 %v2047
        %2152 = vmatprep.subr.bf16.mxu0 %v1535
        %2153 = vmatpush1.bf16.msra.mxu0 %v1534
        %2154 = vmatprep.subr.bf16.mxu0 %v1574
        %2155 = vmatpush1.bf16.msra.mxu0 %v1571
        %2156 = vmatprep.subr.bf16.mxu0 0
        %2157 = vmatpush1.bf16.msra.mxu0 0
        %2158 = vmatprep.subr.bf16.mxu0 0
        %2159 = vmatpush1.bf16.msra.mxu0 0
        %2160 = vmatprep.subr.bf16.mxu0 0
        %2161 = vmatpush1.bf16.msra.mxu0 0
        %2162 = vmatprep.subr.bf16.mxu0 0
        %2163 = vmatpush1.bf16.msra.mxu0 0
        %2164 = vmatprep.subr.bf16.mxu0 0
        %2165 = vmatpush1.bf16.msra.mxu0 0
        %2166 = vmatprep.subr.bf16.mxu0 0
        %2167 = vmatpush1.bf16.msra.mxu0 0
        %2168 = vmatprep.subr.bf16.mxu0 0
        %2169 = vmatpush1.bf16.msra.mxu0 0
        %2170 = vmatprep.subr.bf16.mxu0 0
        %2171 = vmatpush1.bf16.msra.mxu0 0
        %2172 = vmatprep.subr.bf16.mxu0 0
        %2173 = vmatpush1.bf16.msra.mxu0 0
        %2174 = vmatprep.mubr.bf16.mxu0 0
        %2175 = vmatmul.mubr.bf16.gmra.mrb[0].mxu0 %v2058
        %v2176 = vpop.f32.mrb[0].mxu0
        %v2177 = vadd.f32 %v2055, %v2176
        %v2178 = vpop.f32.mrb[0].mxu0
        %v2179 = vadd.f32 %v2055, %v2178
        %v2180 = vpop.f32.mrb[0].mxu0
        %v2181 = vpop.f32.mrb[0].mxu0
        %2182 = vdwg.mxu0
        %2183 = vmatprep.subr.bf16.mxu0 %v2018
        %2184 = vmatpush1.bf16.msra.mxu0 %v2017
        %2185 = vmatprep.subr.bf16.mxu0 %v2026
        %2186 = vmatpush1.bf16.msra.mxu0 %v2025
        %2187 = vmatprep.subr.bf16.mxu0 %v2034
        %2188 = vmatpush1.bf16.msra.mxu0 %v2033
        %2189 = vmatprep.subr.bf16.mxu0 %v2042
        %2190 = vmatpush1.bf16.msra.mxu0 %v2041
        %2191 = vmatprep.subr.bf16.mxu0 %v2050
        %2192 = vmatpush1.bf16.msra.mxu0 %v2049
        %2193 = vmatprep.subr.bf16.mxu0 %v1537
        %2194 = vmatpush1.bf16.msra.mxu0 %v1536
        %2195 = vmatprep.subr.bf16.mxu0 %v1580
        %2196 = vmatpush1.bf16.msra.mxu0 %v1577
        %2197 = vmatprep.subr.bf16.mxu0 0
        %2198 = vmatpush1.bf16.msra.mxu0 0
        %2199 = vmatprep.subr.bf16.mxu0 0
        %2200 = vmatpush1.bf16.msra.mxu0 0
        %2201 = vmatprep.subr.bf16.mxu0 0
        %2202 = vmatpush1.bf16.msra.mxu0 0
        %2203 = vmatprep.subr.bf16.mxu0 0
        %2204 = vmatpush1.bf16.msra.mxu0 0
        %2205 = vmatprep.subr.bf16.mxu0 0
        %2206 = vmatpush1.bf16.msra.mxu0 0
        %2207 = vmatprep.subr.bf16.mxu0 0
        %2208 = vmatpush1.bf16.msra.mxu0 0
        %2209 = vmatprep.subr.bf16.mxu0 0
        %2210 = vmatpush1.bf16.msra.mxu0 0
        %2211 = vmatprep.subr.bf16.mxu0 0
        %2212 = vmatpush1.bf16.msra.mxu0 0
        %2213 = vmatprep.subr.bf16.mxu0 0
        %2214 = vmatpush1.bf16.msra.mxu0 0
        %2215 = vmatprep.mubr.bf16.mxu0 0
        %2216 = vmatmul.mubr.bf16.gmra.mrb[0].mxu0 %v2058
        %v2217 = vpop.f32.mrb[0].mxu0
        %v2218 = vadd.f32 %v2055, %v2217
        %v2219 = vpop.f32.mrb[0].mxu0
        %v2220 = vadd.f32 %v2055, %v2219
        %v2221 = vpop.f32.mrb[0].mxu0
        %v2222 = vpop.f32.mrb[0].mxu0
        %2223 = vdwg.mxu0
        %v2224 = vmax.f32 %v2095, 0.0
        %v2225 = vmax.f32 %v2097, 0.0
        %v2226 = vmax.f32 %v2136, 0.0
        %v2227 = vmax.f32 %v2138, 0.0
        %v2228 = vmax.f32 %v2177, 0.0
        %v2229 = vmax.f32 %v2179, 0.0
        %v2230 = vmax.f32 %v2218, 0.0
        %v2231 = vmax.f32 %v2220, 0.0
        %v2236 = vrot.slane %v1748, 5
        %v2237 = vrot.slane %v1749, 5
        %v2238 = vrot.slane %v2226, 5
        %v2239 = vsel %vm945, %v2236, %v2238
        %v2240 = vrot.slane %v2227, 5
        %v2241 = vsel %vm945, %v2237, %v2240
        %v2242 = vrot.slane %v240, 5
        %v2243 = vsel %vm945, %v2238, %v2242
        %v2244 = vrot.slane %v264, 5
        %v2245 = vsel %vm945, %v2240, %v2244
        %v2256 = vrot.slane %v1750, 2
        %v2257 = vrot.slane %v1751, 2
        %v2258 = vrot.slane %v2228, 2
        %v2259 = vsel %vm954, %v2256, %v2258
        %v2260 = vrot.slane %v2229, 2
        %v2261 = vsel %vm954, %v2257, %v2260
        %v2262 = vrot.slane %v241, 2
        %v2263 = vsel %vm954, %v2258, %v2262
        %v2264 = vrot.slane %v265, 2
        %v2265 = vsel %vm954, %v2260, %v2264
        %v2278 = vrot.slane %v1752, 7
        %v2279 = vrot.slane %v1753, 7
        %v2280 = vrot.slane %v2230, 7
        %v2281 = vsel %vm963, %v2278, %v2280
        %v2282 = vrot.slane %v2231, 7
        %v2283 = vsel %vm963, %v2279, %v2282
        %v2284 = vrot.slane %v242, 7
        %v2285 = vsel %vm963, %v2280, %v2284
        %v2286 = vrot.slane %v266, 7
        %v2287 = vsel %vm963, %v2282, %v2286
        %v2294 = vsel %vm945, %v239, %v2236
        %v2295 = vsel %vm945, %v263, %v2237
        %v2296 = vsel %vm954, %v2243, %v2256
        %v2297 = vsel %vm954, %v2245, %v2257
        %v2298 = vsel %vm963, %v2262, %v2278
        %v2299 = vsel %vm963, %v2264, %v2279
        %v2300 = vld [vmem:[#allocation2 + $0xc] sm:$0xf]
        %v2301 = vpack.c.bf16 %v2224, %v1746
        %v2302 = vpack.c.bf16 %v2225, %v1747
        %v2303 = vpack.c.bf16 %v2239, %v2294
        %v2304 = vpack.c.bf16 %v2241, %v2295
        %v2305 = vpack.c.bf16 %v2259, %v2296
        %v2306 = vpack.c.bf16 %v2261, %v2297
        %v2307 = vpack.c.bf16 %v2298, %v2263
        %v2308 = vpack.c.bf16 %v2299, %v2265
        %v2309 = vpack.c.bf16 %v2285, %v2281
        %v2310 = vpack.c.bf16 %v2287, %v2283
        %v2311 = vld [vmem:[%s4 + $0x18] sm:$0xff]
        %2313 = vset.pattern.permute.xlu0 0
        %2314 = vperm.xlu0 %2313, %v2311
        %v2315 = vpop.permute.xlu0 %2314
        %vm2317 = vcmask 621568
        %v2319 = vsel %vm2317, %v2300, 0
        %v2322 = vsel %vm954, %v2309, 0
        %v2325 = vsel %vm954, %v2310, 0
        %2327 = vmatprep.subr.bf16.mxu0 %v2302
        %2328 = vmatpush1.bf16.msra.mxu0 %v2301
        %2329 = vmatprep.subr.bf16.mxu0 %v2304
        %2330 = vmatpush1.bf16.msra.mxu0 %v2303
        %2331 = vmatprep.subr.bf16.mxu0 %v2306
        %2332 = vmatpush1.bf16.msra.mxu0 %v2305
        %2333 = vmatprep.subr.bf16.mxu0 %v2308
        %2334 = vmatpush1.bf16.msra.mxu0 %v2307
        %2335 = vmatprep.subr.bf16.mxu0 %v2325
        %2336 = vmatpush1.bf16.msra.mxu0 %v2322
        %2337 = vmatprep.subr.bf16.mxu0 0
        %2338 = vmatpush1.bf16.msra.mxu0 0
        %2339 = vmatprep.subr.bf16.mxu0 0
        %2340 = vmatpush1.bf16.msra.mxu0 0
        %2341 = vmatprep.subr.bf16.mxu0 0
        %2342 = vmatpush1.bf16.msra.mxu0 0
        %2343 = vmatprep.subr.bf16.mxu0 0
        %2344 = vmatpush1.bf16.msra.mxu0 0
        %2345 = vmatprep.subr.bf16.mxu0 0
        %2346 = vmatpush1.bf16.msra.mxu0 0
        %2347 = vmatprep.subr.bf16.mxu0 0
        %2348 = vmatpush1.bf16.msra.mxu0 0
        %2349 = vmatprep.subr.bf16.mxu0 0
        %2350 = vmatpush1.bf16.msra.mxu0 0
        %2351 = vmatprep.subr.bf16.mxu0 0
        %2352 = vmatpush1.bf16.msra.mxu0 0
        %2353 = vmatprep.subr.bf16.mxu0 0
        %2354 = vmatpush1.bf16.msra.mxu0 0
        %2355 = vmatprep.subr.bf16.mxu0 0
        %2356 = vmatpush1.bf16.msra.mxu0 0
        %2357 = vmatprep.subr.bf16.mxu0 0
        %2358 = vmatpush1.bf16.msra.mxu0 0
        %2359 = vmatprep.mubr.bf16.mxu0 0
        %2360 = vmatmul.mubr.bf16.gmra.mrb[0].mxu0 %v2319
        %v2361 = vpop.f32.mrb[0].mxu0
        %v2362 = vadd.f32 %v2315, %v2361
        %v2363 = vpop.f32.mrb[0].mxu0
        %v2364 = vadd.f32 %v2315, %v2363
        %v2365 = vpop.f32.mrb[0].mxu0
        %v2366 = vpop.f32.mrb[0].mxu0
        %2367 = vdwg.mxu0
        %v2368 = vmax.f32 %v2362, 0.0
        %v2369 = vmax.f32 %v2364, 0.0
        %v2370 = vld [vmem:[%s3] sm:$0xf]
        %v2371 = vld [vmem:[%s3 + $0x4] sm:$0xf]
        %v2372 = vld [vmem:[%s3 + $0x8] sm:$0xf]
        %v2373 = vld [vmem:[%s3 + $0xc] sm:$0xf]
        %v2374 = vld [vmem:[%s3 + $0x10] sm:$0xf]
        %v2375 = vld [vmem:[%s3 + $0x14] sm:$0xf]
        %v2376 = vpack.c.bf16 %v2368, %v2368
        %v2377 = vpack.c.bf16 %v2369, %v2369
        %v2378 = vld [vmem:[%s4 + $0x20] sm:$0xff]
        %v2379 = vld [vmem:[%s4 + $0x28] sm:$0xff]
        %v2380 = vld [vmem:[%s4 + $0x30] sm:$0xff]
        %v2381 = vld [vmem:[%s4 + $0x38] sm:$0xff]
        %v2382 = vld [vmem:[%s4 + $0x40] sm:$0xff]
        %v2383 = vld [vmem:[%s4 + $0x48] sm:$0xff]
        %2385 = vset.pattern.permute.xlu0 0
        %2386 = vperm.xlu0 %2385, %v2378
        %v2387 = vpop.permute.xlu0 %2386
        %2390 = vset.pattern.permute.xlu0 0
        %2391 = vperm.xlu0 %2390, %v2379
        %v2392 = vpop.permute.xlu0 %2391
        %2395 = vset.pattern.permute.xlu0 0
        %2396 = vperm.xlu0 %2395, %v2380
        %v2397 = vpop.permute.xlu0 %2396
        %2400 = vset.pattern.permute.xlu0 0
        %2401 = vperm.xlu0 %2400, %v2381
        %v2402 = vpop.permute.xlu0 %2401
        %2405 = vset.pattern.permute.xlu0 0
        %2406 = vperm.xlu0 %2405, %v2382
        %v2407 = vpop.permute.xlu0 %2406
        %2410 = vset.pattern.permute.xlu0 0
        %2411 = vperm.xlu0 %2410, %v2383
        %v2412 = vpop.permute.xlu0 %2411
        %v2420 = vunpack.c.l.b16 %v2370
        %v2421 = vunpack.c.l.b16 %v2371
        %v2422 = vunpack.c.l.b16 %v2372
        %v2423 = vunpack.c.l.b16 %v2373
        %v2424 = vunpack.c.l.b16 %v2374
        %v2425 = vunpack.c.l.b16 %v2375
        %v2426 = vpack.c.b16 %v2421, %v2420
        %v2427 = vpack.c.b16 %v2423, %v2422
        %v2428 = vpack.c.b16 %v2425, %v2424
        %vm2429 = vcmask 64512
        %v2431 = vsel %vm2429, %v2426, 0
        %v2434 = vsel %vm2429, %v2427, 0
        %v2437 = vsel %vm2429, %v2428, 0
        %v2440 = vsel %vm972, %v2376, 0
        %v2443 = vsel %vm972, %v2377, 0
        %2445 = vmatprep.subr.bf16.mxu0 %v2443
        %2446 = vmatpush1.bf16.msra.mxu0 %v2440
        %2447 = vmatprep.subr.bf16.mxu0 0
        %2448 = vmatpush1.bf16.msra.mxu0 0
        %2449 = vmatprep.subr.bf16.mxu0 0
        %2450 = vmatpush1.bf16.msra.mxu0 0
        %2451 = vmatprep.subr.bf16.mxu0 0
        %2452 = vmatpush1.bf16.msra.mxu0 0
        %2453 = vmatprep.subr.bf16.mxu0 0
        %2454 = vmatpush1.bf16.msra.mxu0 0
        %2455 = vmatprep.subr.bf16.mxu0 0
        %2456 = vmatpush1.bf16.msra.mxu0 0
        %2457 = vmatprep.subr.bf16.mxu0 0
        %2458 = vmatpush1.bf16.msra.mxu0 0
        %2459 = vmatprep.subr.bf16.mxu0 0
        %2460 = vmatpush1.bf16.msra.mxu0 0
        %2461 = vmatprep.subr.bf16.mxu0 0
        %2462 = vmatpush1.bf16.msra.mxu0 0
        %2463 = vmatprep.subr.bf16.mxu0 0
        %2464 = vmatpush1.bf16.msra.mxu0 0
        %2465 = vmatprep.subr.bf16.mxu0 0
        %2466 = vmatpush1.bf16.msra.mxu0 0
        %2467 = vmatprep.subr.bf16.mxu0 0
        %2468 = vmatpush1.bf16.msra.mxu0 0
        %2469 = vmatprep.subr.bf16.mxu0 0
        %2470 = vmatpush1.bf16.msra.mxu0 0
        %2471 = vmatprep.subr.bf16.mxu0 0
        %2472 = vmatpush1.bf16.msra.mxu0 0
        %2473 = vmatprep.subr.bf16.mxu0 0
        %2474 = vmatpush1.bf16.msra.mxu0 0
        %2475 = vmatprep.subr.bf16.mxu0 0
        %2476 = vmatpush1.bf16.msra.mxu0 0
        %2477 = vmatprep.mubr.bf16.mxu0 0
        %2478 = vmatmul.mubr.bf16.gmra.mrb[0].mxu0 %v2431
        %v2479 = vpop.f32.mrb[0].mxu0
        %v2480 = vadd.f32 %v2387, %v2479
        %v2481 = vpop.f32.mrb[0].mxu0
        %v2482 = vadd.f32 %v2387, %v2481
        %v2483 = vpop.f32.mrb[0].mxu0
        %v2484 = vadd.f32 %v2392, %v2483
        %v2485 = vpop.f32.mrb[0].mxu0
        %v2486 = vadd.f32 %v2392, %v2485
        %2487 = vmatprep.mubr.bf16.mxu0 0
        %2488 = vmatmul.mubr.bf16.gmra.mrb[0].mxu0 %v2434
        %v2489 = vpop.f32.mrb[0].mxu0
        %v2490 = vadd.f32 %v2397, %v2489
        %v2491 = vpop.f32.mrb[0].mxu0
        %v2492 = vadd.f32 %v2397, %v2491
        %v2493 = vpop.f32.mrb[0].mxu0
        %v2494 = vadd.f32 %v2402, %v2493
        %v2495 = vpop.f32.mrb[0].mxu0
        %v2496 = vadd.f32 %v2402, %v2495
        %2497 = vmatprep.mubr.bf16.mxu0 0
        %2498 = vmatmul.mubr.bf16.gmra.mrb[0].mxu0 %v2437
        %v2499 = vpop.f32.mrb[0].mxu0
        %v2500 = vadd.f32 %v2407, %v2499
        %v2501 = vpop.f32.mrb[0].mxu0
        %v2502 = vadd.f32 %v2407, %v2501
        %v2503 = vpop.f32.mrb[0].mxu0
        %v2504 = vadd.f32 %v2412, %v2503
        %v2505 = vpop.f32.mrb[0].mxu0
        %v2506 = vadd.f32 %v2412, %v2505
        %2507 = vdwg.mxu0
        %2508 = vst [vmem:[%s237] sm:$0xff] %v2480
        %2509 = vst [vmem:[%s237 + $0x8] sm:$0xff] %v2482
        %2510 = vst [vmem:[%s237 + $0x10] sm:$0xff] %v2484
        %2511 = vst [vmem:[%s237 + $0x18] sm:$0xff] %v2486
        %2512 = vst [vmem:[%s237 + $0x20] sm:$0xff] %v2490
        %2513 = vst [vmem:[%s237 + $0x28] sm:$0xff] %v2492
        %2514 = vst [vmem:[%s237 + $0x30] sm:$0xff] %v2494
        %2515 = vst [vmem:[%s237 + $0x38] sm:$0xff] %v2496
        %2516 = vst [vmem:[%s237 + $0x40] sm:$0xff] %v2500
        %2517 = vst [vmem:[%s237 + $0x48] sm:$0xff] %v2502
        %2518 = vst [vmem:[%s237 + $0x50] sm:$0xff] %v2504
        %2519 = vst [vmem:[%s237 + $0x58] sm:$0xff] %v2506
        %p2520 = scmp.lt.s32.totalorder %s17, 1
        %s2521 = scalar_select %p2520, %s17, 1
        %s2522 = smul.addr %s2521, 12
        %s2523 = smul.addr %s2522, 8
        %s2524 = scalar_lea.vmem %s5, %s2523
        // Predicated region
        $region45: #{dknet_forward.1} parent=39 // pred_check
          %p2525 = pneg %p145
        $region46: #{dknet_forward.1} parent=39 // pred_check_branch
          %2527 = sbr.rel (%p2525) target = $region48
        $region47: #{dknet_forward.1} parent=39 // pred_region
          _
        $region48: #{dknet_forward.1} parent=39 // pred_fallthru
          _
      $region40: #{dknet_forward.1} parent=5 // pred_fallthru
        _
      %p2528 = scmp.le.s32.totalorder 2, %s12
      // Predicated region
      $region49: #{dknet_forward.1} parent=5 // pred_check
        %p2529 = pneg %p2528
      $region50: #{dknet_forward.1} parent=5 // pred_check_branch
        %2531 = sbr.rel (%p2529) target = $region52
      $region51: #{dknet_forward.1} parent=5 // pred_region
        %s2532 = ssub.s32 %s12, 2
        // Predicated region
        $region53: #{dknet_forward.1} parent=51 // pred_check
          %p2533 = pneg %p151
        $region54: #{dknet_forward.1} parent=51 // pred_check_branch
          %2535 = sbr.rel (%p2533) target = $region56
        $region55: #{dknet_forward.1} parent=51 // pred_region
          %p2536 = scmp.lt.s32.totalorder %s18, 1
          %s2537 = scalar_select %p2536, %s18, 1
          %s2538 = smul.addr %s2537, 12
          %s2539 = smul.addr %s2538, 8
          %s2540 = scalar_lea.vmem %s5, %s2539
        $region56: #{dknet_forward.1} parent=51 // pred_fallthru
          _
      $region52: #{dknet_forward.1} parent=5 // pred_fallthru
        _
    $region6: #{dknet_forward.1} parent=1 // loop_footer
      %s16 = sadd.s32 1, %s12
    $region7: #{dknet_forward.1} parent=1 // loop_footer_branch
      %11 = sbr.rel target = $region3
    $region8: #{dknet_forward.1} parent=1 // loop_exit
      _
    %2541 = vsyncpa [#allocation3], 1
    %s2542 = scalar_lea.sflag [#allocation3], 1
    %2543 = vsyncpa %s2542, 1

</llo_original>
